<compile_context>
chip_gen: v7x
topology: tpu7x:2x2x1
jax: 0.10.0
libtpu: 0.0.40
codegen_flags: <defaults>
</compile_context>

<pallas_src>
import jax
import jax.numpy as jnp
import numpy as np
from jax.experimental import pallas as pl
from jax.experimental.pallas import tpu as pltpu

BN_EPS = 1e-5   # PyTorch BatchNorm1d default eps
L2_EPS = 1e-8   # l2norm eps in the reference code


def visual_sa_kernel(local_ref, glob_ref, wl_ref, bl_ref, wg_ref, bg_ref,
                     wc_ref, out_ref):
    tb, D = out_ref.shape
    R = local_ref.shape[0] // tb

    x = local_ref[...]                                     # (tb*R, D) raw locals, f32
    g = glob_ref[...]                                      # (tb, D) f32

    # embedding_local: Linear (BN scale pre-folded, bf16 MXU operands) -> Tanh.
    # One (tb*R, D) @ (D, D) matmul; M = tb*R sized to fill the MXU height.
    l_emb = jnp.tanh(
        jnp.dot(x.astype(jnp.bfloat16), wl_ref[...],
                preferred_element_type=jnp.float32) + bl_ref[...])   # (tb*R, D) f32

    # embedding_global fused with the (D, 1) common projection:
    # gc = tanh(g @ Wg + bg) * wc  — a single (tb, D) row, so the old
    # (tb, R, D) `common` temporary and its extra full-slab multiply are gone.
    gc = jnp.tanh(
        jnp.dot(g.astype(jnp.bfloat16), wg_ref[...],
                preferred_element_type=jnp.float32) + bg_ref[...]) * wc_ref[...]

    # Region scores: broadcast-mul + lane reduce over D. R % 8 == 0 keeps this
    # sublane split a pure view (no relayout). bc bias dropped (shift-invariant).
    l3 = l_emb.reshape(tb, R, D)
    scores = jnp.sum(l3 * gc[:, None, :], axis=-1)                   # (tb, R)

    # Softmax over regions; denominator reciprocal goes to the idle EUP slot
    # (its per-row scale error cancels under the final l2 normalization).
    m = jnp.max(scores, axis=-1, keepdims=True)
    e = jnp.exp(scores - m)
    w = e * pl.reciprocal(jnp.sum(e, axis=-1, keepdims=True), approx=True)

    # Weighted region sum: VPU broadcast-mul + sublane (XLU) reduce over R.
    # Keeps the MXU slot free and avoids the old block-diagonal matmul whose
    # weight matrix was (TB-1)/TB zeros. Uses the raw f32 locals (exact).
    x3 = x.reshape(tb, R, D)
    new_global = jnp.sum(w[:, :, None] * x3, axis=1)                 # (tb, D) f32

    # l2norm (eps-faithful to the PyTorch l2norm): X / (sqrt(sum X^2) + eps)
    sq = jnp.sum(new_global * new_global, axis=-1, keepdims=True)
    out_ref[...] = (new_global / (jnp.sqrt(sq) + L2_EPS)).astype(out_ref.dtype)


def _vmem_limit_bytes(tb, R, D):
    """Budget VMEM from actual buffer sizes + headroom; cap at 75% of physical."""
    f32, bf16 = 4, 2
    need = (
        2 * tb * R * D * f32      # local tile (double-buffered)
        + 2 * tb * D * f32        # raw_global tile (double-buffered)
        + 2 * tb * D * f32        # output tile (double-buffered)
        + 2 * D * D * bf16        # two DxD weights, Buffered(1) -> single copy
        + 2 * 3 * D * f32         # three (1, D) rows (double-buffered)
    )
    need = 2 * need + (16 << 20)  # 2x safety + headroom for Mosaic scratch/temporaries
    try:
        cap = int(getattr(pltpu.get_tpu_info(), "vmem_capacity_bytes", 64 << 20))
    except Exception:
        cap = 64 << 20            # v7x-safe fallback
    return int(min(max(need, 32 << 20), int(cap * 0.75)))


def visual_sa(local, raw_global, wl_b, bl, wg_b, bg, wc_row, *, batch_tile=16):
    B, R, D = local.shape
    # TODO(synk): non-multiple B would need a padded/masked final batch tile.
    assert B % batch_tile == 0, "demo keeps B a multiple of the batch tile"
    # TODO(synk): general R (e.g. 36) should be padded to a multiple of 8 and the
    # padded region rows masked to -inf before the softmax.
    assert R % 8 == 0, "demo keeps num_region a multiple of 8 (sublane-aligned)"
    tb = batch_tile
    m = tb * R
    # Layout-free flatten done once in XLA so the kernel sees a (tb*R, D) slab
    # directly (no in-kernel relayout of the local tile).
    local_flat = local.reshape(B * R, D)
    return pl.pallas_call(
        visual_sa_kernel,
        out_shape=jax.ShapeDtypeStruct((B, D), jnp.float32),
        grid_spec=pltpu.PrefetchScalarGridSpec(
            num_scalar_prefetch=0,
            grid=(B // tb,),
            in_specs=[
                pl.BlockSpec((m, D),  lambda b: (b, 0)),   # local slab tile
                pl.BlockSpec((tb, D), lambda b: (b, 0)),   # raw_global tile
                # Grid-invariant weights: constant index_map (no re-DMA) and a
                # single buffer (no dead double-buffer VMEM on v7x's 64 MiB).
                pl.BlockSpec((D, D), lambda b: (0, 0),
                             pipeline_mode=pl.Buffered(1)),  # W_local^T (BN folded, bf16)
                pl.BlockSpec((1, D), lambda b: (0, 0)),      # b_local   (BN folded)
                pl.BlockSpec((D, D), lambda b: (0, 0),
                             pipeline_mode=pl.Buffered(1)),  # W_global^T (BN folded, bf16)
                pl.BlockSpec((1, D), lambda b: (0, 0)),      # b_global   (BN folded)
                pl.BlockSpec((1, D), lambda b: (0, 0)),      # W_common as a row
            ],
            out_specs=pl.BlockSpec((tb, D), lambda b: (b, 0)),   # dense (tb, D) store
        ),
        compiler_params=pltpu.CompilerParams(
            dimension_semantics=("parallel",),   # even grid -> both v7x TCs busy
            vmem_limit_bytes=_vmem_limit_bytes(tb, R, D),
        ),
    )(local_flat, raw_global, wl_b, bl, wg_b, bg, wc_row)


def init_params(key, embed_dim):
    """Deterministic init matching VisualSA.init_weights (Linear: U(-r, r), bias 0)."""
    k1, k2, k3 = jax.random.split(key, 3)

    def lin_w(k, fan_in, fan_out):
        r = np.sqrt(6.0) / np.sqrt(fan_in + fan_out)
        # PyTorch Linear weight is (out, in); store transposed (in, out) for x @ W^T.
        return jax.random.uniform(k, (fan_in, fan_out), jnp.float32, -r, r)

    wl_t = lin_w(k1, embed_dim, embed_dim)          # embedding_local Linear
    bl   = jnp.zeros((1, embed_dim), jnp.float32)
    wg_t = lin_w(k2, embed_dim, embed_dim)          # embedding_global Linear
    bg   = jnp.zeros((1, embed_dim), jnp.float32)
    wc_t = lin_w(k3, embed_dim, 1)                  # embedding_common Linear
    bc   = jnp.zeros((1, 1), jnp.float32)
    return wl_t, bl, wg_t, bg, wc_t, bc


def prep_kernel_params(wl_t, bl, wg_t, bg, wc_t, bc):
    """One-time parameter transform for the kernel:
    - fold the eval-mode BatchNorm scale 1/sqrt(1+eps) into the Linears,
    - cast the two (D, D) weights to bf16 (MXU-native operands; dots still
      accumulate in f32 via preferred_element_type),
    - lay W_common out as a (1, D) row; bc is dropped (softmax shift-invariance)."""
    del bc
    s = jnp.float32(1.0 / np.sqrt(1.0 + BN_EPS))
    wl_b = (wl_t * s).astype(jnp.bfloat16)
    wg_b = (wg_t * s).astype(jnp.bfloat16)
    return wl_b, bl * s, wg_b, bg * s, wc_t.reshape(1, -1)


def visual_sa_reference(local, raw_global, wl_t, bl, wg_t, bg, wc_t, bc):
    """Pure-JAX reference mirroring the PyTorch forward (eval mode, raw f32 params)."""
    bn_scale = 1.0 / np.sqrt(1.0 + BN_EPS)
    l_emb = jnp.tanh((local @ wl_t + bl[0]) * bn_scale)               # (B, R, D)
    g_emb = jnp.tanh((raw_global @ wg_t + bg[0]) * bn_scale)          # (B, D)
    common = l_emb * g_emb[:, None, :]                                # (B, R, D)
    weights = (common @ wc_t)[..., 0] + bc[0, 0]                      # (B, R)
    weights = jax.nn.softmax(weights, axis=1)
    new_global = jnp.sum(weights[..., None] * local, axis=1)          # (B, D)
    norm = jnp.sqrt(jnp.sum(new_global ** 2, axis=-1, keepdims=True)) + L2_EPS
    return new_global / norm


if __name__ == "__main__":
    # Demo shapes: lane-dense D=128 (full vreg lanes / MXU K), R=8 regions,
    # batch_tile=16 so the local-embedding matmul M = tb*R = 128 and the grid
    # still has multiple steps per TensorCore.
    B, R, D = 64, 8, 128

    key = jax.random.PRNGKey(0)
    k_loc, k_glob, k_par = jax.random.split(key, 3)

    local = jax.random.normal(k_loc, (B, R, D), jnp.float32)
    raw_global = jax.random.normal(k_glob, (B, D), jnp.float32)

    raw_params = init_params(k_par, D)
    kernel_params = prep_kernel_params(*raw_params)

    out = visual_sa(local, raw_global, *kernel_params, batch_tile=16)
    out = jax.block_until_ready(out)

    ref = visual_sa_reference(local, raw_global, *raw_params)
    # Tolerance deliberately relaxed vs. the f32 reference: the two embedding
    # matmuls use bf16 MXU operands (f32 accumulation), plus MXU-vs-VPU
    # summation order and the EUP approx reciprocal (whose per-row scale error
    # cancels under the l2norm). The weighted region sum and l2norm are exact f32.
    np.testing.assert_allclose(np.asarray(out), np.asarray(ref),
                               rtol=2e-2, atol=1e-2)

    print("KERNEL_OK")
</pallas_src>

<mosaic_0001>
module attributes {stable_mosaic.version = 11 : i64} {
  func.func @visual_sa_kernel(%arg0: i32, %arg1: memref<128x128xf32, #tpu.memory_space<vmem>>, %arg2: memref<16x128xf32, #tpu.memory_space<vmem>>, %arg3: memref<128x128xbf16, #tpu.memory_space<vmem>>, %arg4: memref<1x128xf32, #tpu.memory_space<vmem>>, %arg5: memref<128x128xbf16, #tpu.memory_space<vmem>>, %arg6: memref<1x128xf32, #tpu.memory_space<vmem>>, %arg7: memref<1x128xf32, #tpu.memory_space<vmem>>, %arg8: memref<16x128xf32, #tpu.memory_space<vmem>>) attributes {dimension_semantics = [#tpu.dimension_semantics<parallel>], iteration_bounds = array<i64: 4>, scalar_prefetch = 0 : i64, scratch_operands = 0 : i64, tpu.core_type = #tpu.core_type<tc>, window_params = [{transform_indices = @transform_0, window_bounds = array<i64: 128, 128>}, {transform_indices = @transform_1, window_bounds = array<i64: 16, 128>}, {pipeline_mode = #tpu.pipeline_mode<synchronous>, transform_indices = @transform_2, window_bounds = array<i64: 128, 128>}, {pipeline_mode = #tpu.pipeline_mode<synchronous>, transform_indices = @transform_3, window_bounds = array<i64: 1, 128>}, {pipeline_mode = #tpu.pipeline_mode<synchronous>, transform_indices = @transform_4, window_bounds = array<i64: 128, 128>}, {pipeline_mode = #tpu.pipeline_mode<synchronous>, transform_indices = @transform_5, window_bounds = array<i64: 1, 128>}, {pipeline_mode = #tpu.pipeline_mode<synchronous>, transform_indices = @transform_6, window_bounds = array<i64: 1, 128>}, {transform_indices = @transform_7, window_bounds = array<i64: 16, 128>}]} {
    %c0 = arith.constant 0 : index
    %c0_0 = arith.constant 0 : index
    %0 = vector.load %arg1[%c0, %c0_0] : memref<128x128xf32, #tpu.memory_space<vmem>>, vector<128x128xf32>
    %c0_1 = arith.constant 0 : index
    %c0_2 = arith.constant 0 : index
    %1 = vector.load %arg2[%c0_1, %c0_2] : memref<16x128xf32, #tpu.memory_space<vmem>>, vector<16x128xf32>
    %2 = arith.truncf %0 : vector<128x128xf32> to vector<128x128xbf16>
    %c0_3 = arith.constant 0 : index
    %c0_4 = arith.constant 0 : index
    %3 = vector.load %arg3[%c0_3, %c0_4] : memref<128x128xbf16, #tpu.memory_space<vmem>>, vector<128x128xbf16>
    %cst = arith.constant dense<0.000000e+00> : vector<128x128xf32>
    %4 = tpu.matmul %2, %3, %cst {dimension_numbers = #tpu.dot_dimension_numbers<[1], [0], [0], [1], [0, 0, 1, 1], [], []>} : vector<128x128xbf16>, vector<128x128xbf16>, vector<128x128xf32> -> vector<128x128xf32>
    %c0_5 = arith.constant 0 : index
    %c0_6 = arith.constant 0 : index
    %5 = vector.load %arg4[%c0_5, %c0_6] : memref<1x128xf32, #tpu.memory_space<vmem>>, vector<1x128xf32>
    %6 = vector.broadcast %5 : vector<1x128xf32> to vector<128x128xf32>
    %7 = arith.addf %4, %6 : vector<128x128xf32>
    %8 = math.tanh %7 : vector<128x128xf32>
    %9 = arith.truncf %1 : vector<16x128xf32> to vector<16x128xbf16>
    %c0_7 = arith.constant 0 : index
    %c0_8 = arith.constant 0 : index
    %10 = vector.load %arg5[%c0_7, %c0_8] : memref<128x128xbf16, #tpu.memory_space<vmem>>, vector<128x128xbf16>
    %cst_9 = arith.constant dense<0.000000e+00> : vector<16x128xf32>
    %11 = tpu.matmul %9, %10, %cst_9 {dimension_numbers = #tpu.dot_dimension_numbers<[1], [0], [0], [1], [0, 0, 1, 1], [], []>} : vector<16x128xbf16>, vector<128x128xbf16>, vector<16x128xf32> -> vector<16x128xf32>
    %c0_10 = arith.constant 0 : index
    %c0_11 = arith.constant 0 : index
    %12 = vector.load %arg6[%c0_10, %c0_11] : memref<1x128xf32, #tpu.memory_space<vmem>>, vector<1x128xf32>
    %13 = vector.broadcast %12 : vector<1x128xf32> to vector<16x128xf32>
    %14 = arith.addf %11, %13 : vector<16x128xf32>
    %15 = math.tanh %14 : vector<16x128xf32>
    %c0_12 = arith.constant 0 : index
    %c0_13 = arith.constant 0 : index
    %16 = vector.load %arg7[%c0_12, %c0_13] : memref<1x128xf32, #tpu.memory_space<vmem>>, vector<1x128xf32>
    %17 = vector.broadcast %16 : vector<1x128xf32> to vector<16x128xf32>
    %18 = arith.mulf %15, %17 : vector<16x128xf32>
    %19 = vector.shape_cast %8 : vector<128x128xf32> to vector<16x8x128xf32>
    %20 = vector.shape_cast %18 : vector<16x128xf32> to vector<16x1x128xf32>
    %21 = vector.broadcast %20 : vector<16x1x128xf32> to vector<16x8x128xf32>
    %22 = arith.mulf %19, %21 : vector<16x8x128xf32>
    %cst_14 = arith.constant dense<0.000000e+00> : vector<16x8xf32>
    %23 = vector.multi_reduction <add>, %22, %cst_14 [2] : vector<16x8x128xf32> to vector<16x8xf32>
    %cst_15 = arith.constant dense<0xFF800000> : vector<16xf32>
    %24 = vector.multi_reduction <maximumf>, %23, %cst_15 [1] : vector<16x8xf32> to vector<16xf32>
    %25 = vector.shape_cast %24 : vector<16xf32> to vector<16x1xf32>
    %26 = vector.broadcast %25 : vector<16x1xf32> to vector<16x8xf32>
    %27 = arith.subf %23, %26 : vector<16x8xf32>
    %28 = math.exp %27 : vector<16x8xf32>
    %cst_16 = arith.constant dense<0.000000e+00> : vector<16xf32>
    %29 = vector.multi_reduction <add>, %28, %cst_16 [1] : vector<16x8xf32> to vector<16xf32>
    %30 = vector.shape_cast %29 : vector<16xf32> to vector<16x1xf32>
    %31 = tpu.reciprocal %30 {approx = true} : vector<16x1xf32> -> vector<16x1xf32>
    %32 = vector.broadcast %31 : vector<16x1xf32> to vector<16x8xf32>
    %33 = arith.mulf %28, %32 : vector<16x8xf32>
    %34 = vector.shape_cast %0 : vector<128x128xf32> to vector<16x8x128xf32>
    %35 = vector.shape_cast %33 : vector<16x8xf32> to vector<16x8x1xf32>
    %36 = vector.broadcast %35 : vector<16x8x1xf32> to vector<16x8x128xf32>
    %37 = arith.mulf %36, %34 : vector<16x8x128xf32>
    %cst_17 = arith.constant dense<0.000000e+00> : vector<16x128xf32>
    %38 = vector.multi_reduction <add>, %37, %cst_17 [1] : vector<16x8x128xf32> to vector<16x128xf32>
    %39 = arith.mulf %38, %38 : vector<16x128xf32>
    %cst_18 = arith.constant dense<0.000000e+00> : vector<16xf32>
    %40 = vector.multi_reduction <add>, %39, %cst_18 [1] : vector<16x128xf32> to vector<16xf32>
    %41 = vector.shape_cast %40 : vector<16xf32> to vector<16x1xf32>
    %42 = math.sqrt %41 : vector<16x1xf32>
    %cst_19 = arith.constant 9.99999993E-9 : f32
    %43 = vector.broadcast %cst_19 : f32 to vector<16x1xf32>
    %44 = arith.addf %42, %43 : vector<16x1xf32>
    %45 = vector.broadcast %44 : vector<16x1xf32> to vector<16x128xf32>
    %46 = arith.divf %38, %45 : vector<16x128xf32>
    %c0_20 = arith.constant 0 : index
    %c0_21 = arith.constant 0 : index
    %47 = vector.load %arg8[%c0_20, %c0_21] : memref<16x128xf32, #tpu.memory_space<vmem>>, vector<16x128xf32>
    tpu.vector_store %arg8[%c0_20, %c0_21], %46 {strides = array<i32>} : memref<16x128xf32, #tpu.memory_space<vmem>>, vector<16x128xf32>,
    return
  }
  func.func @transform_0(%arg0: i32) -> (i32, i32) {
    %c0_i32 = arith.constant 0 : i32
    %c0_i32_0 = arith.constant 0 : i32
    return %arg0, %c0_i32 : i32, i32
  }
  func.func @transform_1(%arg0: i32) -> (i32, i32) {
    %c0_i32 = arith.constant 0 : i32
    %c0_i32_0 = arith.constant 0 : i32
    return %arg0, %c0_i32 : i32, i32
  }
  func.func @transform_2(%arg0: i32) -> (i32, i32) {
    %c0_i32 = arith.constant 0 : i32
    %c0_i32_0 = arith.constant 0 : i32
    %c0_i32_1 = arith.constant 0 : i32
    return %c0_i32, %c0_i32_0 : i32, i32
  }
  func.func @transform_3(%arg0: i32) -> (i32, i32) {
    %c0_i32 = arith.constant 0 : i32
    %c0_i32_0 = arith.constant 0 : i32
    %c0_i32_1 = arith.constant 0 : i32
    return %c0_i32, %c0_i32_0 : i32, i32
  }
  func.func @transform_4(%arg0: i32) -> (i32, i32) {
    %c0_i32 = arith.constant 0 : i32
    %c0_i32_0 = arith.constant 0 : i32
    %c0_i32_1 = arith.constant 0 : i32
    return %c0_i32, %c0_i32_0 : i32, i32
  }
  func.func @transform_5(%arg0: i32) -> (i32, i32) {
    %c0_i32 = arith.constant 0 : i32
    %c0_i32_0 = arith.constant 0 : i32
    %c0_i32_1 = arith.constant 0 : i32
    return %c0_i32, %c0_i32_0 : i32, i32
  }
  func.func @transform_6(%arg0: i32) -> (i32, i32) {
    %c0_i32 = arith.constant 0 : i32
    %c0_i32_0 = arith.constant 0 : i32
    %c0_i32_1 = arith.constant 0 : i32
    return %c0_i32, %c0_i32_0 : i32, i32
  }
  func.func @transform_7(%arg0: i32) -> (i32, i32) {
    %c0_i32 = arith.constant 0 : i32
    %c0_i32_0 = arith.constant 0 : i32
    return %arg0, %c0_i32 : i32, i32
  }
}

</mosaic_0001>

<llo_original>
// kernel: tpu_custom_call.1
$region0: #{tpu_custom_call.1}
  #allocation0 [shape = 'u32[]', space=smem, size = 0x4, offset = 0x4, fixed_abs, tag = 'smem constant byte address 0x4 - core index']
  #allocation1 [shape = 'u32[144,128]{1,0:T(1,128)}', space=vmem, size = 0x12000, scoped, tag = 'internal scratch']
  %s0 = inlined_call_operand.hbm [shape: f32[512,128], index: 0, kind: input, shape index: {}]
  %s1 = inlined_call_operand.hbm [shape: f32[64,128], index: 1, kind: input, shape index: {}]
  %s2 = inlined_call_operand.hbm [shape: bf16[128,128], index: 2, kind: input, shape index: {}]
  %s3 = inlined_call_operand.vmem [shape: f32[1,128], index: 3, kind: input, shape index: {}]
  %s4 = inlined_call_operand.hbm [shape: bf16[128,128], index: 4, kind: input, shape index: {}]
  %s5 = inlined_call_operand.vmem [shape: f32[1,128], index: 5, kind: input, shape index: {}]
  %s6 = inlined_call_operand.vmem [shape: f32[1,128], index: 6, kind: input, shape index: {}]
  %s7 = inlined_call_operand.hbm [shape: f32[64,128], index: 7, kind: output, shape index: {}]
  %s8 = sld [smem:[#allocation0]]
  $region77: #{tpu_custom_call.1} parent=0
    _
  %s10 = ssub.s32 1, %s8
  %s11 = scalar_select 0, %s10, %s8
  $region1: #{tpu_custom_call.1} parent=0
    #allocation2 [shape = 'u8[131072]{0}', space=vmem, size = 0x20000, scoped, tag = 'input window, operand 0']
    #allocation3 [shape = 's32[2]{0}', space=sflag, size = 0x8, scoped, tag = 'scoped memory for tpu_custom_call.1']
    #allocation4 [shape = 's32[2]{0}', space=sflag, size = 0x8, scoped, tag = 'scoped memory for tpu_custom_call.1']
    #allocation5 [shape = 'u8[16384]{0}', space=vmem, size = 0x4000, scoped, tag = 'input window, operand 1']
    #allocation6 [shape = 's32[2]{0}', space=sflag, size = 0x8, scoped, tag = 'scoped memory for tpu_custom_call.1']
    #allocation7 [shape = 'u8[32768]{0}', space=vmem, size = 0x8000, scoped, tag = 'input window, operand 2, single buffered']
    #allocation8 [shape = 'u8[32768]{0}', space=vmem, size = 0x8000, scoped, tag = 'input window, operand 4, single buffered']
    #allocation9 [shape = 's32[1]{0}', space=sflag, size = 0x4, scoped, tag = 'scoped memory for tpu_custom_call.1']
    #allocation10 [shape = 'u8[16384]{0}', space=vmem, size = 0x4000, scoped, tag = 'output window, operand 0']
    %12 = vsyncpa [#allocation3], 0
    %s13 = scalar_lea.sflag [#allocation3], 1
    %14 = vsyncpa %s13, 0
    %15 = vsyncpa [#allocation6], 0
    %s16 = scalar_lea.sflag [#allocation6], 1
    %17 = vsyncpa %s16, 0
    %18 = vsyncpa [#allocation9], 0
    %19 = vsyncpa [#allocation4], 0
    %s20 = scalar_lea.sflag [#allocation4], 1
    %21 = vsyncpa %s20, 0
    loop: start=0, step=1, limit=6
    $region2: #{tpu_custom_call.1} parent=1 // loop_pre_header
      _
    $region3: #{tpu_custom_call.1} parent=1 // loop_header
      %s23 = sphi 0, %s27
      %p24 = scmp.ge.s32.totalorder %s23, 6
      %s33 = sphi 0, %s35
      %s36 = sphi 0, %s33
      %s37 = sphi 0, %s36
      %s53 = sphi 0, %s37
      %s59 = sphi 0, %s61
      %s62 = sphi 0, %s59
      %s63 = sphi 0, %s62
      %s79 = sphi 0, %s63
      %s83 = sphi 0, %s83
      %s85 = sphi 0, %s83
      %s86 = sphi 0, %s85
      %s100 = sphi 0, %s86
      %s104 = sphi 0, %s104
      %s106 = sphi 0, %s104
      %s107 = sphi 0, %s106
      %s121 = sphi 0, %s107
      %s125 = sphi 0, %s125
      %s127 = sphi 0, %s125
      %s128 = sphi 0, %s127
      %s142 = sphi 0, %s128
      %s146 = sphi 0, %s146
      %s148 = sphi 0, %s146
      %s149 = sphi 0, %s148
      %s163 = sphi 0, %s149
      %s167 = sphi 0, %s167
      %s169 = sphi 0, %s167
      %s170 = sphi 0, %s169
      %s184 = sphi 0, %s170
      %s190 = sphi 0, %s192
      %s193 = sphi 0, %s190
      %s194 = sphi 0, %s193
      %s210 = sphi 0, %s194
    $region4: #{tpu_custom_call.1} parent=1 // loop_header_branch
      %26 = sbr.rel (%p24) target = $region8
    $region5: #{tpu_custom_call.1} parent=1 // loop_body
      %s28 = ssub.s32 %s23, 1
      %s29 = ssub.s32 %s23, 2
      %s30 = sadd.s32 %s23, 1
      %s31 = ssub.s32 %s23, %s30
      %p32 = scmp.eq.s32.totalorder %s31, 0
      %s34 = sadd.s32 %s33, 1
      %s35 = scalar_select %p32, %s33, %s34
      %p38 = pneg %p32
      %p39 = scmp.eq.s32.totalorder %s23, 3
      %p40 = por %p38, %p39
      %p41 = scmp.ne.s32.totalorder %s33, %s36
      %p42 = scmp.eq.s32.totalorder %s23, 0
      %p43 = por %p41, %p42
      %p44 = scmp.ne.s32.totalorder %s33, %s36
      %p45 = scmp.eq.s32.totalorder %s28, 3
      %p46 = por %p44, %p45
      %p47 = scmp.ne.s32.totalorder %s36, %s37
      %p48 = scmp.eq.s32.totalorder %s28, 0
      %p49 = por %p47, %p48
      %p50 = scmp.ne.s32.totalorder %s36, %s37
      %p51 = scmp.eq.s32.totalorder %s29, 3
      %p52 = por %p50, %p51
      %p54 = scmp.ne.s32.totalorder %s37, %s53
      %p55 = scmp.eq.s32.totalorder %s29, 0
      %p56 = por %p54, %p55
      %s57 = ssub.s32 %s23, %s30
      %p58 = scmp.eq.s32.totalorder %s57, 0
      %s60 = sadd.s32 %s59, 1
      %s61 = scalar_select %p58, %s59, %s60
      %p64 = pneg %p58
      %p65 = scmp.eq.s32.totalorder %s23, 3
      %p66 = por %p64, %p65
      %p67 = scmp.ne.s32.totalorder %s59, %s62
      %p68 = scmp.eq.s32.totalorder %s23, 0
      %p69 = por %p67, %p68
      %p70 = scmp.ne.s32.totalorder %s59, %s62
      %p71 = scmp.eq.s32.totalorder %s28, 3
      %p72 = por %p70, %p71
      %p73 = scmp.ne.s32.totalorder %s62, %s63
      %p74 = scmp.eq.s32.totalorder %s28, 0
      %p75 = por %p73, %p74
      %p76 = scmp.ne.s32.totalorder %s62, %s63
      %p77 = scmp.eq.s32.totalorder %s29, 3
      %p78 = por %p76, %p77
      %p80 = scmp.ne.s32.totalorder %s63, %s79
      %p81 = scmp.eq.s32.totalorder %s29, 0
      %p82 = por %p80, %p81
      %s84 = sadd.s32 %s83, 1
      %p87 = scmp.eq.s32.totalorder %s23, 3
      %p88 = scmp.ne.s32.totalorder %s83, %s85
      %p89 = scmp.eq.s32.totalorder %s23, 0
      %p90 = por %p88, %p89
      %p91 = scmp.ne.s32.totalorder %s83, %s85
      %p92 = scmp.eq.s32.totalorder %s28, 3
      %p93 = por %p91, %p92
      %p94 = scmp.ne.s32.totalorder %s85, %s86
      %p95 = scmp.eq.s32.totalorder %s28, 0
      %p96 = por %p94, %p95
      %p97 = scmp.ne.s32.totalorder %s85, %s86
      %p98 = scmp.eq.s32.totalorder %s29, 3
      %p99 = por %p97, %p98
      %p101 = scmp.ne.s32.totalorder %s86, %s100
      %p102 = scmp.eq.s32.totalorder %s29, 0
      %p103 = por %p101, %p102
      %s105 = sadd.s32 %s104, 1
      %p108 = scmp.eq.s32.totalorder %s23, 3
      %p109 = scmp.ne.s32.totalorder %s104, %s106
      %p110 = scmp.eq.s32.totalorder %s23, 0
      %p111 = por %p109, %p110
      %p112 = scmp.ne.s32.totalorder %s104, %s106
      %p113 = scmp.eq.s32.totalorder %s28, 3
      %p114 = por %p112, %p113
      %p115 = scmp.ne.s32.totalorder %s106, %s107
      %p116 = scmp.eq.s32.totalorder %s28, 0
      %p117 = por %p115, %p116
      %p118 = scmp.ne.s32.totalorder %s106, %s107
      %p119 = scmp.eq.s32.totalorder %s29, 3
      %p120 = por %p118, %p119
      %p122 = scmp.ne.s32.totalorder %s107, %s121
      %p123 = scmp.eq.s32.totalorder %s29, 0
      %p124 = por %p122, %p123
      %s126 = sadd.s32 %s125, 1
      %p129 = scmp.eq.s32.totalorder %s23, 3
      %p130 = scmp.ne.s32.totalorder %s125, %s127
      %p131 = scmp.eq.s32.totalorder %s23, 0
      %p132 = por %p130, %p131
      %p133 = scmp.ne.s32.totalorder %s125, %s127
      %p134 = scmp.eq.s32.totalorder %s28, 3
      %p135 = por %p133, %p134
      %p136 = scmp.ne.s32.totalorder %s127, %s128
      %p137 = scmp.eq.s32.totalorder %s28, 0
      %p138 = por %p136, %p137
      %p139 = scmp.ne.s32.totalorder %s127, %s128
      %p140 = scmp.eq.s32.totalorder %s29, 3
      %p141 = por %p139, %p140
      %p143 = scmp.ne.s32.totalorder %s128, %s142
      %p144 = scmp.eq.s32.totalorder %s29, 0
      %p145 = por %p143, %p144
      %s147 = sadd.s32 %s146, 1
      %p150 = scmp.eq.s32.totalorder %s23, 3
      %p151 = scmp.ne.s32.totalorder %s146, %s148
      %p152 = scmp.eq.s32.totalorder %s23, 0
      %p153 = por %p151, %p152
      %p154 = scmp.ne.s32.totalorder %s146, %s148
      %p155 = scmp.eq.s32.totalorder %s28, 3
      %p156 = por %p154, %p155
      %p157 = scmp.ne.s32.totalorder %s148, %s149
      %p158 = scmp.eq.s32.totalorder %s28, 0
      %p159 = por %p157, %p158
      %p160 = scmp.ne.s32.totalorder %s148, %s149
      %p161 = scmp.eq.s32.totalorder %s29, 3
      %p162 = por %p160, %p161
      %p164 = scmp.ne.s32.totalorder %s149, %s163
      %p165 = scmp.eq.s32.totalorder %s29, 0
      %p166 = por %p164, %p165
      %s168 = sadd.s32 %s167, 1
      %p171 = scmp.eq.s32.totalorder %s23, 3
      %p172 = scmp.ne.s32.totalorder %s167, %s169
      %p173 = scmp.eq.s32.totalorder %s23, 0
      %p174 = por %p172, %p173
      %p175 = scmp.ne.s32.totalorder %s167, %s169
      %p176 = scmp.eq.s32.totalorder %s28, 3
      %p177 = por %p175, %p176
      %p178 = scmp.ne.s32.totalorder %s169, %s170
      %p179 = scmp.eq.s32.totalorder %s28, 0
      %p180 = por %p178, %p179
      %p181 = scmp.ne.s32.totalorder %s169, %s170
      %p182 = scmp.eq.s32.totalorder %s29, 3
      %p183 = por %p181, %p182
      %p185 = scmp.ne.s32.totalorder %s170, %s184
      %p186 = scmp.eq.s32.totalorder %s29, 0
      %p187 = por %p185, %p186
      %s188 = ssub.s32 %s23, %s30
      %p189 = scmp.eq.s32.totalorder %s188, 0
      %s191 = sadd.s32 %s190, 1
      %s192 = scalar_select %p189, %s190, %s191
      %p195 = pneg %p189
      %p196 = scmp.eq.s32.totalorder %s23, 3
      %p197 = por %p195, %p196
      %p198 = scmp.ne.s32.totalorder %s190, %s193
      %p199 = scmp.eq.s32.totalorder %s23, 0
      %p200 = por %p198, %p199
      %p201 = scmp.ne.s32.totalorder %s190, %s193
      %p202 = scmp.eq.s32.totalorder %s28, 3
      %p203 = por %p201, %p202
      %p204 = scmp.ne.s32.totalorder %s193, %s194
      %p205 = scmp.eq.s32.totalorder %s28, 0
      %p206 = por %p204, %p205
      %p207 = scmp.ne.s32.totalorder %s193, %s194
      %p208 = scmp.eq.s32.totalorder %s29, 3
      %p209 = por %p207, %p208
      %p211 = scmp.ne.s32.totalorder %s194, %s210
      %p212 = scmp.eq.s32.totalorder %s29, 0
      %p213 = por %p211, %p212
      %p214 = scmp.le.s32.totalorder 1, %s23
      %p215 = scmp.lt.s32.totalorder %s23, 5
      %p216 = pnand %p214, %p215
      %p217 = pneg %p216
      // Predicated region
      $region9: #{tpu_custom_call.1} parent=5 // pred_check
        _
      $region10: #{tpu_custom_call.1} parent=5 // pred_check_branch
        %219 = sbr.rel (%p216) target = $region12
      $region11: #{tpu_custom_call.1} parent=5 // pred_region
        %s220 = ssub.s32 %s23, 1
        // Predicated region
        $region13: #{tpu_custom_call.1} parent=11 // pred_check
          %p221 = pneg %p96
        $region14: #{tpu_custom_call.1} parent=11 // pred_check_branch
          %223 = sbr.rel (%p221) target = $region16
        $region15: #{tpu_custom_call.1} parent=11 // pred_region
          %s225 = ssub.s32 1024, 1024
          %226 = vsyncadd [#allocation6], %s225
          %s227 = sshll.u32 [#allocation7], 4
          %s228 = int_to_ptr.vmem [resolvable:$true] %s227
          %233 = dma.hbm_to_vmem [thread:$0]  %s2, 1024, %s228, [#allocation6], 64, 64, 4
        $region16: #{tpu_custom_call.1} parent=11 // pred_fallthru
          _
        // Predicated region
        $region17: #{tpu_custom_call.1} parent=11 // pred_check
          %p234 = pneg %p117
        $region18: #{tpu_custom_call.1} parent=11 // pred_check_branch
          %236 = sbr.rel (%p234) target = $region20
        $region19: #{tpu_custom_call.1} parent=11 // pred_region
          _
        $region20: #{tpu_custom_call.1} parent=11 // pred_fallthru
          _
        // Predicated region
        $region21: #{tpu_custom_call.1} parent=11 // pred_check
          %p237 = pneg %p138
        $region22: #{tpu_custom_call.1} parent=11 // pred_check_branch
          %239 = sbr.rel (%p237) target = $region24
        $region23: #{tpu_custom_call.1} parent=11 // pred_region
          %s241 = ssub.s32 1024, 1024
          %242 = vsyncadd [#allocation9], %s241
          %s243 = sshll.u32 [#allocation8], 4
          %s244 = int_to_ptr.vmem [resolvable:$true] %s243
          %249 = dma.hbm_to_vmem [thread:$0]  %s4, 1024, %s244, [#allocation9], 64, 64, 4
        $region24: #{tpu_custom_call.1} parent=11 // pred_fallthru
          _
        // Predicated region
        $region25: #{tpu_custom_call.1} parent=11 // pred_check
          %p250 = pneg %p159
        $region26: #{tpu_custom_call.1} parent=11 // pred_check_branch
          %252 = sbr.rel (%p250) target = $region28
        $region27: #{tpu_custom_call.1} parent=11 // pred_region
          _
        $region28: #{tpu_custom_call.1} parent=11 // pred_fallthru
          _
        // Predicated region
        $region29: #{tpu_custom_call.1} parent=11 // pred_check
          %p253 = pneg %p180
        $region30: #{tpu_custom_call.1} parent=11 // pred_check_branch
          %255 = sbr.rel (%p253) target = $region32
        $region31: #{tpu_custom_call.1} parent=11 // pred_region
          _
        $region32: #{tpu_custom_call.1} parent=11 // pred_fallthru
          _
      $region12: #{tpu_custom_call.1} parent=5 // pred_fallthru
        _
      %p256 = scmp.lt.s32.totalorder %s23, 4
      // Predicated region
      $region33: #{tpu_custom_call.1} parent=5 // pred_check
        %p257 = pneg %p256
      $region34: #{tpu_custom_call.1} parent=5 // pred_check_branch
        %259 = sbr.rel (%p257) target = $region36
      $region35: #{tpu_custom_call.1} parent=5 // pred_region
        // Predicated region
        $region37: #{tpu_custom_call.1} parent=35 // pred_check
          %p260 = pneg %p43
        $region38: #{tpu_custom_call.1} parent=35 // pred_check_branch
          %262 = sbr.rel (%p260) target = $region40
        $region39: #{tpu_custom_call.1} parent=35 // pred_region
          %s263 = sand.u32 %s33, 1
          %s264 = scalar_lea.sflag [#allocation3], %s263
          %s265 = sand.u32 %s33, 1
          %s266 = smul.addr %s265, 128
          %s267 = scalar_lea.vmem [#allocation2], %s266
          %s268 = smul.u32 16, %s23
          %s270 = ssub.s32 2048, 2048
          %271 = vsyncadd %s264, %s270
          %s272 = smul.addr %s268, 128
          %s273 = scalar_lea.hbm %s0, %s272
          %s274 = sshll.u32 %s267, 4
          %s275 = int_to_ptr.vmem [resolvable:$true] %s274
          %280 = dma.hbm_to_vmem [thread:$0]  %s273, 2048, %s275, %s264, 128, 128, 8
        $region40: #{tpu_custom_call.1} parent=35 // pred_fallthru
          _
        // Predicated region
        $region41: #{tpu_custom_call.1} parent=35 // pred_check
          %p281 = pneg %p69
        $region42: #{tpu_custom_call.1} parent=35 // pred_check_branch
          %283 = sbr.rel (%p281) target = $region44
        $region43: #{tpu_custom_call.1} parent=35 // pred_region
          %s284 = sand.u32 %s23, 1
          %s285 = scalar_lea.sflag [#allocation6], %s284
          %s286 = sand.u32 %s59, 1
          %s287 = smul.addr %s286, 16
          %s288 = scalar_lea.vmem [#allocation5], %s287
          %s289 = smul.u32 2, %s23
          %s291 = ssub.s32 256, 256
          %292 = vsyncadd %s285, %s291
          %s293 = smul.addr %s289, 128
          %s294 = scalar_lea.hbm %s1, %s293
          %s295 = sshll.u32 %s288, 4
          %s296 = int_to_ptr.vmem [resolvable:$true] %s295
          %301 = dma.hbm_to_vmem [thread:$0]  %s294, 256, %s296, %s285, 128, 128, 8
        $region44: #{tpu_custom_call.1} parent=35 // pred_fallthru
          _
      $region36: #{tpu_custom_call.1} parent=5 // pred_fallthru
        _
      %p302 = scmp.le.s32.totalorder 1, %s23
      %p303 = scmp.lt.s32.totalorder %s23, 5
      %p304 = pnand %p302, %p303
      %p305 = pneg %p304
      // Predicated region
      $region45: #{tpu_custom_call.1} parent=5 // pred_check
        _
      $region46: #{tpu_custom_call.1} parent=5 // pred_check_branch
        %307 = sbr.rel (%p304) target = $region48
      $region47: #{tpu_custom_call.1} parent=5 // pred_region
        %s308 = ssub.s32 %s23, 1
        %s309 = sand.u32 %s36, 1
        %s310 = scalar_lea.sflag [#allocation3], %s309
        %s311 = sand.u32 %s36, 1
        %s312 = smul.addr %s311, 128
        %s313 = scalar_lea.vmem [#allocation2], %s312
        // Predicated region
        $region49: #{tpu_custom_call.1} parent=47 // pred_check
          %p314 = pneg %p49
        $region50: #{tpu_custom_call.1} parent=47 // pred_check_branch
          %316 = sbr.rel (%p314) target = $region52
        $region51: #{tpu_custom_call.1} parent=47 // pred_region
          %317 = dma.done %s310, 2048
        $region52: #{tpu_custom_call.1} parent=47 // pred_fallthru
          _
        %s318 = sand.u32 %s28, 1
        %s319 = scalar_lea.sflag [#allocation6], %s318
        %s320 = sand.u32 %s62, 1
        %s321 = smul.addr %s320, 16
        %s322 = scalar_lea.vmem [#allocation5], %s321
        // Predicated region
        $region53: #{tpu_custom_call.1} parent=47 // pred_check
          %p323 = pneg %p75
        $region54: #{tpu_custom_call.1} parent=47 // pred_check_branch
          %325 = sbr.rel (%p323) target = $region56
        $region55: #{tpu_custom_call.1} parent=47 // pred_region
          %326 = dma.done %s319, 256
        $region56: #{tpu_custom_call.1} parent=47 // pred_fallthru
          _
        // Predicated region
        $region57: #{tpu_custom_call.1} parent=47 // pred_check
          %p327 = pneg %p96
        $region58: #{tpu_custom_call.1} parent=47 // pred_check_branch
          %329 = sbr.rel (%p327) target = $region60
        $region59: #{tpu_custom_call.1} parent=47 // pred_region
          %330 = dma.done [#allocation6], 1024
        $region60: #{tpu_custom_call.1} parent=47 // pred_fallthru
          _
        // Predicated region
        $region61: #{tpu_custom_call.1} parent=47 // pred_check
          %p331 = pneg %p138
        $region62: #{tpu_custom_call.1} parent=47 // pred_check_branch
          %333 = sbr.rel (%p331) target = $region64
        $region63: #{tpu_custom_call.1} parent=47 // pred_region
          %334 = dma.done [#allocation9], 1024
        $region64: #{tpu_custom_call.1} parent=47 // pred_fallthru
          _
        %s335 = sand.u32 %s36, 1
        %s336 = scalar_lea.sflag [#allocation3], %s335
        %s337 = sand.u32 %s36, 1
        %s338 = smul.addr %s337, 128
        %s339 = scalar_lea.vmem [#allocation2], %s338
        %p340 = pneg %p49
        %p341 = pneg %p46
        %s342 = sand.u32 %s28, 1
        %s343 = scalar_lea.sflag [#allocation6], %s342
        %s344 = sand.u32 %s62, 1
        %s345 = smul.addr %s344, 16
        %s346 = scalar_lea.vmem [#allocation5], %s345
        %p347 = pneg %p75
        %p348 = pneg %p72
        %p349 = pneg %p96
        %p350 = pneg %p93
        %p351 = pneg %p117
        %p352 = pneg %p114
        %p353 = pneg %p138
        %p354 = pneg %p135
        %p355 = pneg %p159
        %p356 = pneg %p156
        %p357 = pneg %p180
        %p358 = pneg %p177
        %p359 = pneg %p206
        %p360 = pneg %p203
        %s361 = sand.u32 %s193, 1
        %s362 = scalar_lea.sflag [#allocation4], %s361
        %s363 = sand.u32 %s193, 1
        %s364 = smul.addr %s363, 16
        %s365 = scalar_lea.vmem [#allocation10], %s364
        %s366 = smul.u32 16, %s28
        %s367 = smul.u32 2, %s28
        %s368 = smul.u32 2, %s28
        %v370 = vld [vmem:[%s313] sm:$0xff]
        %v371 = vld [vmem:[%s313 + $0x8] sm:$0xff]
        %v372 = vld [vmem:[%s313 + $0x10] sm:$0xff]
        %v373 = vld [vmem:[%s313 + $0x18] sm:$0xff]
        %v374 = vld [vmem:[%s313 + $0x20] sm:$0xff]
        %v375 = vld [vmem:[%s313 + $0x28] sm:$0xff]
        %v376 = vld [vmem:[%s313 + $0x30] sm:$0xff]
        %v377 = vld [vmem:[%s313 + $0x38] sm:$0xff]
        %v378 = vld [vmem:[%s313 + $0x40] sm:$0xff]
        %v379 = vld [vmem:[%s313 + $0x48] sm:$0xff]
        %v380 = vld [vmem:[%s313 + $0x50] sm:$0xff]
        %v381 = vld [vmem:[%s313 + $0x58] sm:$0xff]
        %v382 = vld [vmem:[%s313 + $0x60] sm:$0xff]
        %v383 = vld [vmem:[%s313 + $0x68] sm:$0xff]
        %v384 = vld [vmem:[%s313 + $0x70] sm:$0xff]
        %v385 = vld [vmem:[%s313 + $0x78] sm:$0xff]
        %v386 = vld [vmem:[%s322] sm:$0xff]
        %v387 = vld [vmem:[%s322 + $0x8] sm:$0xff]
        %v388 = vpack.c.bf16 %v371, %v370
        %v389 = vpack.c.bf16 %v373, %v372
        %v390 = vpack.c.bf16 %v375, %v374
        %v391 = vpack.c.bf16 %v377, %v376
        %v392 = vpack.c.bf16 %v379, %v378
        %v393 = vpack.c.bf16 %v381, %v380
        %v394 = vpack.c.bf16 %v383, %v382
        %v395 = vpack.c.bf16 %v385, %v384
        %v396 = vld [vmem:[#allocation7] sm:$0xf]
        %v397 = vld [vmem:[#allocation7 + $0x4] sm:$0xf]
        %v398 = vld [vmem:[#allocation7 + $0x8] sm:$0xf]
        %v399 = vld [vmem:[#allocation7 + $0xc] sm:$0xf]
        %v400 = vld [vmem:[#allocation7 + $0x10] sm:$0xf]
        %v401 = vld [vmem:[#allocation7 + $0x14] sm:$0xf]
        %v402 = vld [vmem:[#allocation7 + $0x18] sm:$0xf]
        %v403 = vld [vmem:[#allocation7 + $0x1c] sm:$0xf]
        %v404 = vld [vmem:[#allocation7 + $0x20] sm:$0xf]
        %v405 = vld [vmem:[#allocation7 + $0x24] sm:$0xf]
        %v406 = vld [vmem:[#allocation7 + $0x28] sm:$0xf]
        %v407 = vld [vmem:[#allocation7 + $0x2c] sm:$0xf]
        %v408 = vld [vmem:[#allocation7 + $0x30] sm:$0xf]
        %v409 = vld [vmem:[#allocation7 + $0x34] sm:$0xf]
        %v410 = vld [vmem:[#allocation7 + $0x38] sm:$0xf]
        %v411 = vld [vmem:[#allocation7 + $0x3c] sm:$0xf]
        %v412 = vld [vmem:[%s3] sm:$0x1]
        %v414 = vlaneseq
        %v415 = vshrl.u32 %v414, 7
        %v416 = vsub.s32 0, %v415
        %v417 = vrot.slane %v412, %v416
        %v435 = vunpack.c.l.b16 %v396
        %v436 = vunpack.c.l.b16 %v397
        %v437 = vunpack.c.l.b16 %v398
        %v438 = vunpack.c.l.b16 %v399
        %v439 = vunpack.c.l.b16 %v400
        %v440 = vunpack.c.l.b16 %v401
        %v441 = vunpack.c.l.b16 %v402
        %v442 = vunpack.c.l.b16 %v403
        %v443 = vunpack.c.l.b16 %v404
        %v444 = vunpack.c.l.b16 %v405
        %v445 = vunpack.c.l.b16 %v406
        %v446 = vunpack.c.l.b16 %v407
        %v447 = vunpack.c.l.b16 %v408
        %v448 = vunpack.c.l.b16 %v409
        %v449 = vunpack.c.l.b16 %v410
        %v450 = vunpack.c.l.b16 %v411
        %v451 = vpack.c.b16 %v436, %v435
        %v452 = vpack.c.b16 %v438, %v437
        %v453 = vpack.c.b16 %v440, %v439
        %v454 = vpack.c.b16 %v442, %v441
        %v455 = vpack.c.b16 %v444, %v443
        %v456 = vpack.c.b16 %v446, %v445
        %v457 = vpack.c.b16 %v448, %v447
        %v458 = vpack.c.b16 %v450, %v449
        %467 = vmatprep.subr.bf16.mxu0 0
        %468 = vmatpush1.bf16.msra.mxu0 %v451
        %469 = vmatprep.subr.bf16.mxu0 0
        %470 = vmatpush1.bf16.msra.mxu0 %v452
        %471 = vmatprep.subr.bf16.mxu0 0
        %472 = vmatpush1.bf16.msra.mxu0 %v453
        %473 = vmatprep.subr.bf16.mxu0 0
        %474 = vmatpush1.bf16.msra.mxu0 %v454
        %475 = vmatprep.subr.bf16.mxu0 0
        %476 = vmatpush1.bf16.msra.mxu0 %v455
        %477 = vmatprep.subr.bf16.mxu0 0
        %478 = vmatpush1.bf16.msra.mxu0 %v456
        %479 = vmatprep.subr.bf16.mxu0 0
        %480 = vmatpush1.bf16.msra.mxu0 %v457
        %481 = vmatprep.subr.bf16.mxu0 0
        %482 = vmatpush1.bf16.msra.mxu0 %v458
        %483 = vmatprep.subr.bf16.mxu0 0
        %484 = vmatpush1.bf16.msra.mxu0 0
        %485 = vmatprep.subr.bf16.mxu0 0
        %486 = vmatpush1.bf16.msra.mxu0 0
        %487 = vmatprep.subr.bf16.mxu0 0
        %488 = vmatpush1.bf16.msra.mxu0 0
        %489 = vmatprep.subr.bf16.mxu0 0
        %490 = vmatpush1.bf16.msra.mxu0 0
        %491 = vmatprep.subr.bf16.mxu0 0
        %492 = vmatpush1.bf16.msra.mxu0 0
        %493 = vmatprep.subr.bf16.mxu0 0
        %494 = vmatpush1.bf16.msra.mxu0 0
        %495 = vmatprep.subr.bf16.mxu0 0
        %496 = vmatpush1.bf16.msra.mxu0 0
        %497 = vmatprep.subr.bf16.mxu0 0
        %498 = vmatpush1.bf16.msra.mxu0 0
        %499 = vmatprep.mubr.bf16.mxu0 0
        %500 = vmatmul.mubr.bf16.gmra.mrb[0].mxu0 %v388
        %v501 = vpop.f32.mrb[0].mxu0
        %v502 = vadd.f32 %v417, %v501
        %v503 = vpop.f32.mrb[0].mxu0
        %v504 = vpop.f32.mrb[0].mxu0
        %v505 = vadd.f32 %v417, %v504
        %v506 = vpop.f32.mrb[0].mxu0
        %507 = vmatprep.mubr.bf16.mxu0 0
        %508 = vmatmul.mubr.bf16.gmra.mrb[0].mxu0 %v389
        %v509 = vpop.f32.mrb[0].mxu0
        %v510 = vadd.f32 %v417, %v509
        %v511 = vpop.f32.mrb[0].mxu0
        %v512 = vpop.f32.mrb[0].mxu0
        %v513 = vadd.f32 %v417, %v512
        %v514 = vpop.f32.mrb[0].mxu0
        %515 = vmatprep.mubr.bf16.mxu0 0
        %516 = vmatmul.mubr.bf16.gmra.mrb[0].mxu0 %v390
        %v517 = vpop.f32.mrb[0].mxu0
        %v518 = vadd.f32 %v417, %v517
        %v519 = vpop.f32.mrb[0].mxu0
        %v520 = vpop.f32.mrb[0].mxu0
        %v521 = vadd.f32 %v417, %v520
        %v522 = vpop.f32.mrb[0].mxu0
        %523 = vmatprep.mubr.bf16.mxu0 0
        %524 = vmatmul.mubr.bf16.gmra.mrb[0].mxu0 %v391
        %v525 = vpop.f32.mrb[0].mxu0
        %v526 = vadd.f32 %v417, %v525
        %v527 = vpop.f32.mrb[0].mxu0
        %v528 = vpop.f32.mrb[0].mxu0
        %v529 = vadd.f32 %v417, %v528
        %v530 = vpop.f32.mrb[0].mxu0
        %531 = vmatprep.mubr.bf16.mxu0 0
        %532 = vmatmul.mubr.bf16.gmra.mrb[0].mxu0 %v392
        %v533 = vpop.f32.mrb[0].mxu0
        %v534 = vadd.f32 %v417, %v533
        %v535 = vpop.f32.mrb[0].mxu0
        %v536 = vpop.f32.mrb[0].mxu0
        %v537 = vadd.f32 %v417, %v536
        %v538 = vpop.f32.mrb[0].mxu0
        %539 = vmatprep.mubr.bf16.mxu0 0
        %540 = vmatmul.mubr.bf16.gmra.mrb[0].mxu0 %v393
        %v541 = vpop.f32.mrb[0].mxu0
        %v542 = vadd.f32 %v417, %v541
        %v543 = vpop.f32.mrb[0].mxu0
        %v544 = vpop.f32.mrb[0].mxu0
        %v545 = vadd.f32 %v417, %v544
        %v546 = vpop.f32.mrb[0].mxu0
        %547 = vmatprep.mubr.bf16.mxu0 0
        %548 = vmatmul.mubr.bf16.gmra.mrb[0].mxu0 %v394
        %v549 = vpop.f32.mrb[0].mxu0
        %v550 = vadd.f32 %v417, %v549
        %v551 = vpop.f32.mrb[0].mxu0
        %v552 = vpop.f32.mrb[0].mxu0
        %v553 = vadd.f32 %v417, %v552
        %v554 = vpop.f32.mrb[0].mxu0
        %555 = vmatprep.mubr.bf16.mxu0 0
        %556 = vmatmul.mubr.bf16.gmra.mrb[0].mxu0 %v395
        %v557 = vpop.f32.mrb[0].mxu0
        %v558 = vadd.f32 %v417, %v557
        %v559 = vpop.f32.mrb[0].mxu0
        %v560 = vpop.f32.mrb[0].mxu0
        %v561 = vadd.f32 %v417, %v560
        %v562 = vpop.f32.mrb[0].mxu0
        %563 = vdwg.mxu0
        %v564 = vtanh.pop %v502
        %v565 = vtanh.pop %v505
        %v566 = vtanh.pop %v510
        %v567 = vtanh.pop %v513
        %v568 = vtanh.pop %v518
        %v569 = vtanh.pop %v521
        %v570 = vtanh.pop %v526
        %v571 = vtanh.pop %v529
        %v572 = vtanh.pop %v534
        %v573 = vtanh.pop %v537
        %v574 = vtanh.pop %v542
        %v575 = vtanh.pop %v545
        %v576 = vtanh.pop %v550
        %v577 = vtanh.pop %v553
        %v578 = vtanh.pop %v558
        %v579 = vtanh.pop %v561
        %v580 = vpack.c.bf16 %v387, %v386
        %v581 = vld [vmem:[#allocation8] sm:$0xf]
        %v582 = vld [vmem:[#allocation8 + $0x4] sm:$0xf]
        %v583 = vld [vmem:[#allocation8 + $0x8] sm:$0xf]
        %v584 = vld [vmem:[#allocation8 + $0xc] sm:$0xf]
        %v585 = vld [vmem:[#allocation8 + $0x10] sm:$0xf]
        %v586 = vld [vmem:[#allocation8 + $0x14] sm:$0xf]
        %v587 = vld [vmem:[#allocation8 + $0x18] sm:$0xf]
        %v588 = vld [vmem:[#allocation8 + $0x1c] sm:$0xf]
        %v589 = vld [vmem:[#allocation8 + $0x20] sm:$0xf]
        %v590 = vld [vmem:[#allocation8 + $0x24] sm:$0xf]
        %v591 = vld [vmem:[#allocation8 + $0x28] sm:$0xf]
        %v592 = vld [vmem:[#allocation8 + $0x2c] sm:$0xf]
        %v593 = vld [vmem:[#allocation8 + $0x30] sm:$0xf]
        %v594 = vld [vmem:[#allocation8 + $0x34] sm:$0xf]
        %v595 = vld [vmem:[#allocation8 + $0x38] sm:$0xf]
        %v596 = vld [vmem:[#allocation8 + $0x3c] sm:$0xf]
        %v597 = vld [vmem:[%s5] sm:$0x1]
        %v599 = vlaneseq
        %v600 = vshrl.u32 %v599, 7
        %v601 = vsub.s32 0, %v600
        %v602 = vrot.slane %v597, %v601
        %v620 = vunpack.c.l.b16 %v581
        %v621 = vunpack.c.l.b16 %v582
        %v622 = vunpack.c.l.b16 %v583
        %v623 = vunpack.c.l.b16 %v584
        %v624 = vunpack.c.l.b16 %v585
        %v625 = vunpack.c.l.b16 %v586
        %v626 = vunpack.c.l.b16 %v587
        %v627 = vunpack.c.l.b16 %v588
        %v628 = vunpack.c.l.b16 %v589
        %v629 = vunpack.c.l.b16 %v590
        %v630 = vunpack.c.l.b16 %v591
        %v631 = vunpack.c.l.b16 %v592
        %v632 = vunpack.c.l.b16 %v593
        %v633 = vunpack.c.l.b16 %v594
        %v634 = vunpack.c.l.b16 %v595
        %v635 = vunpack.c.l.b16 %v596
        %v636 = vpack.c.b16 %v621, %v620
        %v637 = vpack.c.b16 %v623, %v622
        %v638 = vpack.c.b16 %v625, %v624
        %v639 = vpack.c.b16 %v627, %v626
        %v640 = vpack.c.b16 %v629, %v628
        %v641 = vpack.c.b16 %v631, %v630
        %v642 = vpack.c.b16 %v633, %v632
        %v643 = vpack.c.b16 %v635, %v634
        %652 = vmatprep.subr.bf16.mxu0 0
        %653 = vmatpush1.bf16.msra.mxu0 %v636
        %654 = vmatprep.subr.bf16.mxu0 0
        %655 = vmatpush1.bf16.msra.mxu0 %v637
        %656 = vmatprep.subr.bf16.mxu0 0
        %657 = vmatpush1.bf16.msra.mxu0 %v638
        %658 = vmatprep.subr.bf16.mxu0 0
        %659 = vmatpush1.bf16.msra.mxu0 %v639
        %660 = vmatprep.subr.bf16.mxu0 0
        %661 = vmatpush1.bf16.msra.mxu0 %v640
        %662 = vmatprep.subr.bf16.mxu0 0
        %663 = vmatpush1.bf16.msra.mxu0 %v641
        %664 = vmatprep.subr.bf16.mxu0 0
        %665 = vmatpush1.bf16.msra.mxu0 %v642
        %666 = vmatprep.subr.bf16.mxu0 0
        %667 = vmatpush1.bf16.msra.mxu0 %v643
        %668 = vmatprep.subr.bf16.mxu0 0
        %669 = vmatpush1.bf16.msra.mxu0 0
        %670 = vmatprep.subr.bf16.mxu0 0
        %671 = vmatpush1.bf16.msra.mxu0 0
        %672 = vmatprep.subr.bf16.mxu0 0
        %673 = vmatpush1.bf16.msra.mxu0 0
        %674 = vmatprep.subr.bf16.mxu0 0
        %675 = vmatpush1.bf16.msra.mxu0 0
        %676 = vmatprep.subr.bf16.mxu0 0
        %677 = vmatpush1.bf16.msra.mxu0 0
        %678 = vmatprep.subr.bf16.mxu0 0
        %679 = vmatpush1.bf16.msra.mxu0 0
        %680 = vmatprep.subr.bf16.mxu0 0
        %681 = vmatpush1.bf16.msra.mxu0 0
        %682 = vmatprep.subr.bf16.mxu0 0
        %683 = vmatpush1.bf16.msra.mxu0 0
        %684 = vmatprep.mubr.bf16.mxu0 0
        %685 = vmatmul.mubr.bf16.gmra.mrb[0].mxu0 %v580
        %v686 = vpop.f32.mrb[0].mxu0
        %v687 = vadd.f32 %v602, %v686
        %v688 = vpop.f32.mrb[0].mxu0
        %v689 = vpop.f32.mrb[0].mxu0
        %v690 = vadd.f32 %v602, %v689
        %v691 = vpop.f32.mrb[0].mxu0
        %692 = vdwg.mxu0
        %v693 = vtanh.pop %v687
        %v694 = vtanh.pop %v690
        %v695 = vld [vmem:[%s6] sm:$0x1]
        %v697 = vlaneseq
        %v698 = vshrl.u32 %v697, 7
        %v699 = vsub.s32 0, %v698
        %v700 = vrot.slane %v695, %v699
        %v702 = vmul.f32 %v693, %v700
        %v703 = vmul.f32 %v694, %v700
        %v706 = vcombine.high %v702, %v702
        %v708 = vunpack.c.l.s4 1966171168
        %v709 = vunpack.c.0.s8 %v708
        %v710 = vlaneseq
        %v711 = vshrl.u32 %v710, 7
        %v712 = vsub.s32 %v709, %v711
        %v713 = vrot.slane %v702, %v712
        %v715 = vunpack.c.l.s4 1966171168
        %v716 = vunpack.c.0.s8 %v715
        %v717 = vlaneseq
        %v718 = vshrl.u32 %v717, 7
        %v719 = vsub.s32 %v716, %v718
        %v720 = vrot.slane %v706, %v719
        %v721 = vcombine.high %v713, %v713
        %v722 = vcombine.high %v720, %v720
        %v724 = vunpack.c.l.s4 1966171168
        %v725 = vunpack.c.0.s8 %v724
        %v726 = vlaneseq
        %v727 = vshrl.u32 %v726, 7
        %v728 = vsub.s32 %v725, %v727
        %v729 = vrot.slane %v713, %v728
        %v731 = vunpack.c.l.s4 1966171168
        %v732 = vunpack.c.0.s8 %v731
        %v733 = vlaneseq
        %v734 = vshrl.u32 %v733, 7
        %v735 = vsub.s32 %v732, %v734
        %v736 = vrot.slane %v720, %v735
        %v738 = vunpack.c.l.s4 1966171168
        %v739 = vunpack.c.0.s8 %v738
        %v740 = vlaneseq
        %v741 = vshrl.u32 %v740, 7
        %v742 = vsub.s32 %v739, %v741
        %v743 = vrot.slane %v721, %v742
        %v745 = vunpack.c.l.s4 1966171168
        %v746 = vunpack.c.0.s8 %v745
        %v747 = vlaneseq
        %v748 = vshrl.u32 %v747, 7
        %v749 = vsub.s32 %v746, %v748
        %v750 = vrot.slane %v722, %v749
        %v751 = vcombine.high %v729, %v729
        %v752 = vcombine.high %v736, %v736
        %v753 = vcombine.high %v743, %v743
        %v754 = vcombine.high %v750, %v750
        %v755 = vcombine.high %v703, %v703
        %v757 = vunpack.c.l.s4 1966171168
        %v758 = vunpack.c.0.s8 %v757
        %v759 = vlaneseq
        %v760 = vshrl.u32 %v759, 7
        %v761 = vsub.s32 %v758, %v760
        %v762 = vrot.slane %v703, %v761
        %v764 = vunpack.c.l.s4 1966171168
        %v765 = vunpack.c.0.s8 %v764
        %v766 = vlaneseq
        %v767 = vshrl.u32 %v766, 7
        %v768 = vsub.s32 %v765, %v767
        %v769 = vrot.slane %v755, %v768
        %v770 = vcombine.high %v762, %v762
        %v771 = vcombine.high %v769, %v769
        %v773 = vunpack.c.l.s4 1966171168
        %v774 = vunpack.c.0.s8 %v773
        %v775 = vlaneseq
        %v776 = vshrl.u32 %v775, 7
        %v777 = vsub.s32 %v774, %v776
        %v778 = vrot.slane %v762, %v777
        %v780 = vunpack.c.l.s4 1966171168
        %v781 = vunpack.c.0.s8 %v780
        %v782 = vlaneseq
        %v783 = vshrl.u32 %v782, 7
        %v784 = vsub.s32 %v781, %v783
        %v785 = vrot.slane %v769, %v784
        %v787 = vunpack.c.l.s4 1966171168
        %v788 = vunpack.c.0.s8 %v787
        %v789 = vlaneseq
        %v790 = vshrl.u32 %v789, 7
        %v791 = vsub.s32 %v788, %v790
        %v792 = vrot.slane %v770, %v791
        %v794 = vunpack.c.l.s4 1966171168
        %v795 = vunpack.c.0.s8 %v794
        %v796 = vlaneseq
        %v797 = vshrl.u32 %v796, 7
        %v798 = vsub.s32 %v795, %v797
        %v799 = vrot.slane %v771, %v798
        %v800 = vcombine.high %v778, %v778
        %v801 = vcombine.high %v785, %v785
        %v802 = vcombine.high %v792, %v792
        %v803 = vcombine.high %v799, %v799
        %v804 = vlaneseq
        %v805 = vshrl.u32 %v804, 7
        %v806 = vsub.s32 0, %v805
        %v807 = vrot.slane %v729, %v806
        %v808 = vlaneseq
        %v809 = vshrl.u32 %v808, 7
        %v810 = vsub.s32 0, %v809
        %v811 = vrot.slane %v743, %v810
        %v812 = vlaneseq
        %v813 = vshrl.u32 %v812, 7
        %v814 = vsub.s32 0, %v813
        %v815 = vrot.slane %v751, %v814
        %v816 = vlaneseq
        %v817 = vshrl.u32 %v816, 7
        %v818 = vsub.s32 0, %v817
        %v819 = vrot.slane %v753, %v818
        %v820 = vlaneseq
        %v821 = vshrl.u32 %v820, 7
        %v822 = vsub.s32 0, %v821
        %v823 = vrot.slane %v736, %v822
        %v824 = vlaneseq
        %v825 = vshrl.u32 %v824, 7
        %v826 = vsub.s32 0, %v825
        %v827 = vrot.slane %v750, %v826
        %v828 = vlaneseq
        %v829 = vshrl.u32 %v828, 7
        %v830 = vsub.s32 0, %v829
        %v831 = vrot.slane %v752, %v830
        %v832 = vlaneseq
        %v833 = vshrl.u32 %v832, 7
        %v834 = vsub.s32 0, %v833
        %v835 = vrot.slane %v754, %v834
        %v836 = vlaneseq
        %v837 = vshrl.u32 %v836, 7
        %v838 = vsub.s32 0, %v837
        %v839 = vrot.slane %v778, %v838
        %v840 = vlaneseq
        %v841 = vshrl.u32 %v840, 7
        %v842 = vsub.s32 0, %v841
        %v843 = vrot.slane %v792, %v842
        %v844 = vlaneseq
        %v845 = vshrl.u32 %v844, 7
        %v846 = vsub.s32 0, %v845
        %v847 = vrot.slane %v800, %v846
        %v848 = vlaneseq
        %v849 = vshrl.u32 %v848, 7
        %v850 = vsub.s32 0, %v849
        %v851 = vrot.slane %v802, %v850
        %v852 = vlaneseq
        %v853 = vshrl.u32 %v852, 7
        %v854 = vsub.s32 0, %v853
        %v855 = vrot.slane %v785, %v854
        %v856 = vlaneseq
        %v857 = vshrl.u32 %v856, 7
        %v858 = vsub.s32 0, %v857
        %v859 = vrot.slane %v799, %v858
        %v860 = vlaneseq
        %v861 = vshrl.u32 %v860, 7
        %v862 = vsub.s32 0, %v861
        %v863 = vrot.slane %v801, %v862
        %v864 = vlaneseq
        %v865 = vshrl.u32 %v864, 7
        %v866 = vsub.s32 0, %v865
        %v867 = vrot.slane %v803, %v866
        %v884 = vmul.f32 %v564, %v807
        %v885 = vmul.f32 %v565, %v811
        %v886 = vmul.f32 %v566, %v815
        %v887 = vmul.f32 %v567, %v819
        %v888 = vmul.f32 %v568, %v823
        %v889 = vmul.f32 %v569, %v827
        %v890 = vmul.f32 %v570, %v831
        %v891 = vmul.f32 %v571, %v835
        %v892 = vmul.f32 %v572, %v839
        %v893 = vmul.f32 %v573, %v843
        %v894 = vmul.f32 %v574, %v847
        %v895 = vmul.f32 %v575, %v851
        %v896 = vmul.f32 %v576, %v855
        %v897 = vmul.f32 %v577, %v859
        %v898 = vmul.f32 %v578, %v863
        %v899 = vmul.f32 %v579, %v867
        %900 = vadd.xlane.f32.xlu0 %v884
        %v901 = vpop.xlane.xlu0 %900
        %902 = vadd.xlane.f32.xlu0 %v885
        %v903 = vpop.xlane.xlu0 %902
        %904 = vadd.xlane.f32.xlu0 %v886
        %v905 = vpop.xlane.xlu0 %904
        %906 = vadd.xlane.f32.xlu0 %v887
        %v907 = vpop.xlane.xlu0 %906
        %908 = vadd.xlane.f32.xlu0 %v888
        %v909 = vpop.xlane.xlu0 %908
        %910 = vadd.xlane.f32.xlu0 %v889
        %v911 = vpop.xlane.xlu0 %910
        %912 = vadd.xlane.f32.xlu0 %v890
        %v913 = vpop.xlane.xlu0 %912
        %914 = vadd.xlane.f32.xlu0 %v891
        %v915 = vpop.xlane.xlu0 %914
        %916 = vadd.xlane.f32.xlu0 %v892
        %v917 = vpop.xlane.xlu0 %916
        %918 = vadd.xlane.f32.xlu0 %v893
        %v919 = vpop.xlane.xlu0 %918
        %920 = vadd.xlane.f32.xlu0 %v894
        %v921 = vpop.xlane.xlu0 %920
        %922 = vadd.xlane.f32.xlu0 %v895
        %v923 = vpop.xlane.xlu0 %922
        %924 = vadd.xlane.f32.xlu0 %v896
        %v925 = vpop.xlane.xlu0 %924
        %926 = vadd.xlane.f32.xlu0 %v897
        %v927 = vpop.xlane.xlu0 %926
        %928 = vadd.xlane.f32.xlu0 %v898
        %v929 = vpop.xlane.xlu0 %928
        %930 = vadd.xlane.f32.xlu0 %v899
        %v931 = vpop.xlane.xlu0 %930
        %v948 = vlaneseq
        %v949 = vand.u32 %v948, 127
        %v950 = vlaneseq
        %v951 = vshrl.u32 %v950, 7
        %v952 = vsub.s32 %v949, %v951
        %v953 = vrot.slane %v901, %v952
        %v954 = vlaneseq
        %v955 = vshrl.u32 %v954, 7
        %v956 = vsub.s32 %v949, %v955
        %v957 = vrot.slane %v903, %v956
        %v958 = vlaneseq
        %v959 = vshrl.u32 %v958, 7
        %v960 = vsub.s32 %v949, %v959
        %v961 = vrot.slane %v905, %v960
        %v962 = vlaneseq
        %v963 = vshrl.u32 %v962, 7
        %v964 = vsub.s32 %v949, %v963
        %v965 = vrot.slane %v907, %v964
        %v966 = vlaneseq
        %v967 = vshrl.u32 %v966, 7
        %v968 = vsub.s32 %v949, %v967
        %v969 = vrot.slane %v909, %v968
        %v970 = vlaneseq
        %v971 = vshrl.u32 %v970, 7
        %v972 = vsub.s32 %v949, %v971
        %v973 = vrot.slane %v911, %v972
        %v974 = vlaneseq
        %v975 = vshrl.u32 %v974, 7
        %v976 = vsub.s32 %v949, %v975
        %v977 = vrot.slane %v913, %v976
        %v978 = vlaneseq
        %v979 = vshrl.u32 %v978, 7
        %v980 = vsub.s32 %v949, %v979
        %v981 = vrot.slane %v915, %v980
        %v982 = vlaneseq
        %v983 = vshrl.u32 %v982, 7
        %v984 = vsub.s32 %v949, %v983
        %v985 = vrot.slane %v917, %v984
        %v986 = vlaneseq
        %v987 = vshrl.u32 %v986, 7
        %v988 = vsub.s32 %v949, %v987
        %v989 = vrot.slane %v919, %v988
        %v990 = vlaneseq
        %v991 = vshrl.u32 %v990, 7
        %v992 = vsub.s32 %v949, %v991
        %v993 = vrot.slane %v921, %v992
        %v994 = vlaneseq
        %v995 = vshrl.u32 %v994, 7
        %v996 = vsub.s32 %v949, %v995
        %v997 = vrot.slane %v923, %v996
        %v998 = vlaneseq
        %v999 = vshrl.u32 %v998, 7
        %v1000 = vsub.s32 %v949, %v999
        %v1001 = vrot.slane %v925, %v1000
        %v1002 = vlaneseq
        %v1003 = vshrl.u32 %v1002, 7
        %v1004 = vsub.s32 %v949, %v1003
        %v1005 = vrot.slane %v927, %v1004
        %v1006 = vlaneseq
        %v1007 = vshrl.u32 %v1006, 7
        %v1008 = vsub.s32 %v949, %v1007
        %v1009 = vrot.slane %v929, %v1008
        %v1010 = vlaneseq
        %v1011 = vshrl.u32 %v1010, 7
        %v1012 = vsub.s32 %v949, %v1011
        %v1013 = vrot.slane %v931, %v1012
        %vm1014 = vcmask 1041409
        %v1015 = vsel %vm1014, %v957, %v953
        %vm1016 = vcmask 1042434
        %v1017 = vsel %vm1016, %v961, %v1015
        %vm1018 = vcmask 1043459
        %v1019 = vsel %vm1018, %v965, %v1017
        %vm1020 = vcmask 1044484
        %v1021 = vsel %vm1020, %v969, %v1019
        %vm1022 = vcmask 1045509
        %v1023 = vsel %vm1022, %v973, %v1021
        %vm1024 = vcmask 1046534
        %v1025 = vsel %vm1024, %v977, %v1023
        %vm1026 = vcmask 1047559
        %v1027 = vsel %vm1026, %v981, %v1025
        %v1028 = vsel %vm1014, %v989, %v985
        %v1029 = vsel %vm1016, %v993, %v1028
        %v1030 = vsel %vm1018, %v997, %v1029
        %v1031 = vsel %vm1020, %v1001, %v1030
        %v1032 = vsel %vm1022, %v1005, %v1031
        %v1033 = vsel %vm1024, %v1009, %v1032
        %v1034 = vsel %vm1026, %v1013, %v1033
        %vm1037 = vcmask 64512
        %v1038 = vsel %vm1037, %v1027, -inf
        %1039 = vmax.xlane.f32.xlu0 %v1038
        %v1040 = vpop.xlane.xlu0 %1039
        %v1041 = vsel %vm1037, %v1034, -inf
        %1042 = vmax.xlane.f32.xlu0 %v1041
        %v1043 = vpop.xlane.xlu0 %1042
        %v1046 = vlaneseq
        %v1047 = vshrl.u32 %v1046, 7
        %v1048 = vsub.s32 0, %v1047
        %v1049 = vrot.slane %v1040, %v1048
        %v1050 = vlaneseq
        %v1051 = vshrl.u32 %v1050, 7
        %v1052 = vsub.s32 1, %v1051
        %v1053 = vrot.slane %v1040, %v1052
        %v1054 = vlaneseq
        %v1055 = vshrl.u32 %v1054, 7
        %v1056 = vsub.s32 2, %v1055
        %v1057 = vrot.slane %v1040, %v1056
        %v1058 = vlaneseq
        %v1059 = vshrl.u32 %v1058, 7
        %v1060 = vsub.s32 3, %v1059
        %v1061 = vrot.slane %v1040, %v1060
        %v1062 = vlaneseq
        %v1063 = vshrl.u32 %v1062, 7
        %v1064 = vsub.s32 4, %v1063
        %v1065 = vrot.slane %v1040, %v1064
        %v1066 = vlaneseq
        %v1067 = vshrl.u32 %v1066, 7
        %v1068 = vsub.s32 5, %v1067
        %v1069 = vrot.slane %v1040, %v1068
        %v1070 = vlaneseq
        %v1071 = vshrl.u32 %v1070, 7
        %v1072 = vsub.s32 6, %v1071
        %v1073 = vrot.slane %v1040, %v1072
        %v1074 = vlaneseq
        %v1075 = vshrl.u32 %v1074, 7
        %v1076 = vsub.s32 7, %v1075
        %v1077 = vrot.slane %v1040, %v1076
        %v1078 = vlaneseq
        %v1079 = vshrl.u32 %v1078, 7
        %v1080 = vsub.s32 0, %v1079
        %v1081 = vrot.slane %v1043, %v1080
        %v1082 = vlaneseq
        %v1083 = vshrl.u32 %v1082, 7
        %v1084 = vsub.s32 1, %v1083
        %v1085 = vrot.slane %v1043, %v1084
        %v1086 = vlaneseq
        %v1087 = vshrl.u32 %v1086, 7
        %v1088 = vsub.s32 2, %v1087
        %v1089 = vrot.slane %v1043, %v1088
        %v1090 = vlaneseq
        %v1091 = vshrl.u32 %v1090, 7
        %v1092 = vsub.s32 3, %v1091
        %v1093 = vrot.slane %v1043, %v1092
        %v1094 = vlaneseq
        %v1095 = vshrl.u32 %v1094, 7
        %v1096 = vsub.s32 4, %v1095
        %v1097 = vrot.slane %v1043, %v1096
        %v1098 = vlaneseq
        %v1099 = vshrl.u32 %v1098, 7
        %v1100 = vsub.s32 5, %v1099
        %v1101 = vrot.slane %v1043, %v1100
        %v1102 = vlaneseq
        %v1103 = vshrl.u32 %v1102, 7
        %v1104 = vsub.s32 6, %v1103
        %v1105 = vrot.slane %v1043, %v1104
        %v1106 = vlaneseq
        %v1107 = vshrl.u32 %v1106, 7
        %v1108 = vsub.s32 7, %v1107
        %v1109 = vrot.slane %v1043, %v1108
        %v1126 = vsub.f32 %v901, %v1049
        %v1127 = vsub.f32 %v903, %v1053
        %v1128 = vsub.f32 %v905, %v1057
        %v1129 = vsub.f32 %v907, %v1061
        %v1130 = vsub.f32 %v909, %v1065
        %v1131 = vsub.f32 %v911, %v1069
        %v1132 = vsub.f32 %v913, %v1073
        %v1133 = vsub.f32 %v915, %v1077
        %v1134 = vsub.f32 %v917, %v1081
        %v1135 = vsub.f32 %v919, %v1085
        %v1136 = vsub.f32 %v921, %v1089
        %v1137 = vsub.f32 %v923, %v1093
        %v1138 = vsub.f32 %v925, %v1097
        %v1139 = vsub.f32 %v927, %v1101
        %v1140 = vsub.f32 %v929, %v1105
        %v1141 = vsub.f32 %v931, %v1109
        %v1142 = vmul.f32 %v1126, 1.442695
        %v1143 = vpow.pop %v1142
        %v1144 = vmul.f32 %v1127, 1.442695
        %v1145 = vpow.pop %v1144
        %v1146 = vmul.f32 %v1128, 1.442695
        %v1147 = vpow.pop %v1146
        %v1148 = vmul.f32 %v1129, 1.442695
        %v1149 = vpow.pop %v1148
        %v1150 = vmul.f32 %v1130, 1.442695
        %v1151 = vpow.pop %v1150
        %v1152 = vmul.f32 %v1131, 1.442695
        %v1153 = vpow.pop %v1152
        %v1154 = vmul.f32 %v1132, 1.442695
        %v1155 = vpow.pop %v1154
        %v1156 = vmul.f32 %v1133, 1.442695
        %v1157 = vpow.pop %v1156
        %v1158 = vmul.f32 %v1134, 1.442695
        %v1159 = vpow.pop %v1158
        %v1160 = vmul.f32 %v1135, 1.442695
        %v1161 = vpow.pop %v1160
        %v1162 = vmul.f32 %v1136, 1.442695
        %v1163 = vpow.pop %v1162
        %v1164 = vmul.f32 %v1137, 1.442695
        %v1165 = vpow.pop %v1164
        %v1166 = vmul.f32 %v1138, 1.442695
        %v1167 = vpow.pop %v1166
        %v1168 = vmul.f32 %v1139, 1.442695
        %v1169 = vpow.pop %v1168
        %v1170 = vmul.f32 %v1140, 1.442695
        %v1171 = vpow.pop %v1170
        %v1172 = vmul.f32 %v1141, 1.442695
        %v1173 = vpow.pop %v1172
        %1190 = vset.pattern.permute.xlu0 0
        %1191 = vperm.xlu0 %1190, %v1143
        %v1192 = vpop.permute.xlu0 %1191
        %1193 = vset.pattern.permute.xlu0 0
        %1194 = vperm.xlu0 %1193, %v1145
        %v1195 = vpop.permute.xlu0 %1194
        %1196 = vset.pattern.permute.xlu0 0
        %1197 = vperm.xlu0 %1196, %v1147
        %v1198 = vpop.permute.xlu0 %1197
        %1199 = vset.pattern.permute.xlu0 0
        %1200 = vperm.xlu0 %1199, %v1149
        %v1201 = vpop.permute.xlu0 %1200
        %1202 = vset.pattern.permute.xlu0 0
        %1203 = vperm.xlu0 %1202, %v1151
        %v1204 = vpop.permute.xlu0 %1203
        %1205 = vset.pattern.permute.xlu0 0
        %1206 = vperm.xlu0 %1205, %v1153
        %v1207 = vpop.permute.xlu0 %1206
        %1208 = vset.pattern.permute.xlu0 0
        %1209 = vperm.xlu0 %1208, %v1155
        %v1210 = vpop.permute.xlu0 %1209
        %1211 = vset.pattern.permute.xlu0 0
        %1212 = vperm.xlu0 %1211, %v1157
        %v1213 = vpop.permute.xlu0 %1212
        %1214 = vset.pattern.permute.xlu0 0
        %1215 = vperm.xlu0 %1214, %v1159
        %v1216 = vpop.permute.xlu0 %1215
        %1217 = vset.pattern.permute.xlu0 0
        %1218 = vperm.xlu0 %1217, %v1161
        %v1219 = vpop.permute.xlu0 %1218
        %1220 = vset.pattern.permute.xlu0 0
        %1221 = vperm.xlu0 %1220, %v1163
        %v1222 = vpop.permute.xlu0 %1221
        %1223 = vset.pattern.permute.xlu0 0
        %1224 = vperm.xlu0 %1223, %v1165
        %v1225 = vpop.permute.xlu0 %1224
        %1226 = vset.pattern.permute.xlu0 0
        %1227 = vperm.xlu0 %1226, %v1167
        %v1228 = vpop.permute.xlu0 %1227
        %1229 = vset.pattern.permute.xlu0 0
        %1230 = vperm.xlu0 %1229, %v1169
        %v1231 = vpop.permute.xlu0 %1230
        %1232 = vset.pattern.permute.xlu0 0
        %1233 = vperm.xlu0 %1232, %v1171
        %v1234 = vpop.permute.xlu0 %1233
        %1235 = vset.pattern.permute.xlu0 0
        %1236 = vperm.xlu0 %1235, %v1173
        %v1237 = vpop.permute.xlu0 %1236
        %v1238 = vlaneseq
        %v1239 = vshrl.u32 %v1238, 7
        %v1240 = vsub.s32 %v949, %v1239
        %v1241 = vrot.slane %v1192, %v1240
        %v1242 = vlaneseq
        %v1243 = vshrl.u32 %v1242, 7
        %v1244 = vsub.s32 %v949, %v1243
        %v1245 = vrot.slane %v1195, %v1244
        %v1246 = vlaneseq
        %v1247 = vshrl.u32 %v1246, 7
        %v1248 = vsub.s32 %v949, %v1247
        %v1249 = vrot.slane %v1198, %v1248
        %v1250 = vlaneseq
        %v1251 = vshrl.u32 %v1250, 7
        %v1252 = vsub.s32 %v949, %v1251
        %v1253 = vrot.slane %v1201, %v1252
        %v1254 = vlaneseq
        %v1255 = vshrl.u32 %v1254, 7
        %v1256 = vsub.s32 %v949, %v1255
        %v1257 = vrot.slane %v1204, %v1256
        %v1258 = vlaneseq
        %v1259 = vshrl.u32 %v1258, 7
        %v1260 = vsub.s32 %v949, %v1259
        %v1261 = vrot.slane %v1207, %v1260
        %v1262 = vlaneseq
        %v1263 = vshrl.u32 %v1262, 7
        %v1264 = vsub.s32 %v949, %v1263
        %v1265 = vrot.slane %v1210, %v1264
        %v1266 = vlaneseq
        %v1267 = vshrl.u32 %v1266, 7
        %v1268 = vsub.s32 %v949, %v1267
        %v1269 = vrot.slane %v1213, %v1268
        %v1270 = vlaneseq
        %v1271 = vshrl.u32 %v1270, 7
        %v1272 = vsub.s32 %v949, %v1271
        %v1273 = vrot.slane %v1216, %v1272
        %v1274 = vlaneseq
        %v1275 = vshrl.u32 %v1274, 7
        %v1276 = vsub.s32 %v949, %v1275
        %v1277 = vrot.slane %v1219, %v1276
        %v1278 = vlaneseq
        %v1279 = vshrl.u32 %v1278, 7
        %v1280 = vsub.s32 %v949, %v1279
        %v1281 = vrot.slane %v1222, %v1280
        %v1282 = vlaneseq
        %v1283 = vshrl.u32 %v1282, 7
        %v1284 = vsub.s32 %v949, %v1283
        %v1285 = vrot.slane %v1225, %v1284
        %v1286 = vlaneseq
        %v1287 = vshrl.u32 %v1286, 7
        %v1288 = vsub.s32 %v949, %v1287
        %v1289 = vrot.slane %v1228, %v1288
        %v1290 = vlaneseq
        %v1291 = vshrl.u32 %v1290, 7
        %v1292 = vsub.s32 %v949, %v1291
        %v1293 = vrot.slane %v1231, %v1292
        %v1294 = vlaneseq
        %v1295 = vshrl.u32 %v1294, 7
        %v1296 = vsub.s32 %v949, %v1295
        %v1297 = vrot.slane %v1234, %v1296
        %v1298 = vlaneseq
        %v1299 = vshrl.u32 %v1298, 7
        %v1300 = vsub.s32 %v949, %v1299
        %v1301 = vrot.slane %v1237, %v1300
        %v1302 = vsel %vm1014, %v1245, %v1241
        %v1303 = vsel %vm1016, %v1249, %v1302
        %v1304 = vsel %vm1018, %v1253, %v1303
        %v1305 = vsel %vm1020, %v1257, %v1304
        %v1306 = vsel %vm1022, %v1261, %v1305
        %v1307 = vsel %vm1024, %v1265, %v1306
        %v1308 = vsel %vm1026, %v1269, %v1307
        %v1309 = vsel %vm1014, %v1277, %v1273
        %v1310 = vsel %vm1016, %v1281, %v1309
        %v1311 = vsel %vm1018, %v1285, %v1310
        %v1312 = vsel %vm1020, %v1289, %v1311
        %v1313 = vsel %vm1022, %v1293, %v1312
        %v1314 = vsel %vm1024, %v1297, %v1313
        %v1315 = vsel %vm1026, %v1301, %v1314
        %v1318 = vsel %vm1037, %v1308, 0.0
        %1319 = vadd.xlane.f32.xlu0 %v1318
        %v1320 = vpop.xlane.xlu0 %1319
        %v1321 = vsel %vm1037, %v1315, 0.0
        %1322 = vadd.xlane.f32.xlu0 %v1321
        %v1323 = vpop.xlane.xlu0 %1322
        %v1324 = vrcp.pop %v1320
        %v1325 = vrcp.pop %v1323
        %v1328 = vlaneseq
        %v1329 = vshrl.u32 %v1328, 7
        %v1330 = vsub.s32 0, %v1329
        %v1331 = vrot.slane %v1324, %v1330
        %v1332 = vlaneseq
        %v1333 = vshrl.u32 %v1332, 7
        %v1334 = vsub.s32 1, %v1333
        %v1335 = vrot.slane %v1324, %v1334
        %v1336 = vlaneseq
        %v1337 = vshrl.u32 %v1336, 7
        %v1338 = vsub.s32 2, %v1337
        %v1339 = vrot.slane %v1324, %v1338
        %v1340 = vlaneseq
        %v1341 = vshrl.u32 %v1340, 7
        %v1342 = vsub.s32 3, %v1341
        %v1343 = vrot.slane %v1324, %v1342
        %v1344 = vlaneseq
        %v1345 = vshrl.u32 %v1344, 7
        %v1346 = vsub.s32 4, %v1345
        %v1347 = vrot.slane %v1324, %v1346
        %v1348 = vlaneseq
        %v1349 = vshrl.u32 %v1348, 7
        %v1350 = vsub.s32 5, %v1349
        %v1351 = vrot.slane %v1324, %v1350
        %v1352 = vlaneseq
        %v1353 = vshrl.u32 %v1352, 7
        %v1354 = vsub.s32 6, %v1353
        %v1355 = vrot.slane %v1324, %v1354
        %v1356 = vlaneseq
        %v1357 = vshrl.u32 %v1356, 7
        %v1358 = vsub.s32 7, %v1357
        %v1359 = vrot.slane %v1324, %v1358
        %v1360 = vlaneseq
        %v1361 = vshrl.u32 %v1360, 7
        %v1362 = vsub.s32 0, %v1361
        %v1363 = vrot.slane %v1325, %v1362
        %v1364 = vlaneseq
        %v1365 = vshrl.u32 %v1364, 7
        %v1366 = vsub.s32 1, %v1365
        %v1367 = vrot.slane %v1325, %v1366
        %v1368 = vlaneseq
        %v1369 = vshrl.u32 %v1368, 7
        %v1370 = vsub.s32 2, %v1369
        %v1371 = vrot.slane %v1325, %v1370
        %v1372 = vlaneseq
        %v1373 = vshrl.u32 %v1372, 7
        %v1374 = vsub.s32 3, %v1373
        %v1375 = vrot.slane %v1325, %v1374
        %v1376 = vlaneseq
        %v1377 = vshrl.u32 %v1376, 7
        %v1378 = vsub.s32 4, %v1377
        %v1379 = vrot.slane %v1325, %v1378
        %v1380 = vlaneseq
        %v1381 = vshrl.u32 %v1380, 7
        %v1382 = vsub.s32 5, %v1381
        %v1383 = vrot.slane %v1325, %v1382
        %v1384 = vlaneseq
        %v1385 = vshrl.u32 %v1384, 7
        %v1386 = vsub.s32 6, %v1385
        %v1387 = vrot.slane %v1325, %v1386
        %v1388 = vlaneseq
        %v1389 = vshrl.u32 %v1388, 7
        %v1390 = vsub.s32 7, %v1389
        %v1391 = vrot.slane %v1325, %v1390
        %v1408 = vmul.f32 %v1143, %v1331
        %v1409 = vmul.f32 %v1145, %v1335
        %v1410 = vmul.f32 %v1147, %v1339
        %v1411 = vmul.f32 %v1149, %v1343
        %v1412 = vmul.f32 %v1151, %v1347
        %v1413 = vmul.f32 %v1153, %v1351
        %v1414 = vmul.f32 %v1155, %v1355
        %v1415 = vmul.f32 %v1157, %v1359
        %v1416 = vmul.f32 %v1159, %v1363
        %v1417 = vmul.f32 %v1161, %v1367
        %v1418 = vmul.f32 %v1163, %v1371
        %v1419 = vmul.f32 %v1165, %v1375
        %v1420 = vmul.f32 %v1167, %v1379
        %v1421 = vmul.f32 %v1169, %v1383
        %v1422 = vmul.f32 %v1171, %v1387
        %v1423 = vmul.f32 %v1173, %v1391
        %1425 = vset.pattern.permute.xlu0 0
        %1426 = vperm.xlu0 %1425, %v1408
        %v1427 = vpop.permute.xlu0 %1426
        %1430 = vset.pattern.permute.xlu0 0
        %1431 = vperm.xlu0 %1430, %v1409
        %v1432 = vpop.permute.xlu0 %1431
        %1435 = vset.pattern.permute.xlu0 0
        %1436 = vperm.xlu0 %1435, %v1410
        %v1437 = vpop.permute.xlu0 %1436
        %1440 = vset.pattern.permute.xlu0 0
        %1441 = vperm.xlu0 %1440, %v1411
        %v1442 = vpop.permute.xlu0 %1441
        %1445 = vset.pattern.permute.xlu0 0
        %1446 = vperm.xlu0 %1445, %v1412
        %v1447 = vpop.permute.xlu0 %1446
        %1450 = vset.pattern.permute.xlu0 0
        %1451 = vperm.xlu0 %1450, %v1413
        %v1452 = vpop.permute.xlu0 %1451
        %1455 = vset.pattern.permute.xlu0 0
        %1456 = vperm.xlu0 %1455, %v1414
        %v1457 = vpop.permute.xlu0 %1456
        %1460 = vset.pattern.permute.xlu0 0
        %1461 = vperm.xlu0 %1460, %v1415
        %v1462 = vpop.permute.xlu0 %1461
        %1465 = vset.pattern.permute.xlu0 0
        %1466 = vperm.xlu0 %1465, %v1416
        %v1467 = vpop.permute.xlu0 %1466
        %1470 = vset.pattern.permute.xlu0 0
        %1471 = vperm.xlu0 %1470, %v1417
        %v1472 = vpop.permute.xlu0 %1471
        %1475 = vset.pattern.permute.xlu0 0
        %1476 = vperm.xlu0 %1475, %v1418
        %v1477 = vpop.permute.xlu0 %1476
        %1480 = vset.pattern.permute.xlu0 0
        %1481 = vperm.xlu0 %1480, %v1419
        %v1482 = vpop.permute.xlu0 %1481
        %1485 = vset.pattern.permute.xlu0 0
        %1486 = vperm.xlu0 %1485, %v1420
        %v1487 = vpop.permute.xlu0 %1486
        %1490 = vset.pattern.permute.xlu0 0
        %1491 = vperm.xlu0 %1490, %v1421
        %v1492 = vpop.permute.xlu0 %1491
        %1495 = vset.pattern.permute.xlu0 0
        %1496 = vperm.xlu0 %1495, %v1422
        %v1497 = vpop.permute.xlu0 %1496
        %1500 = vset.pattern.permute.xlu0 0
        %1501 = vperm.xlu0 %1500, %v1423
        %v1502 = vpop.permute.xlu0 %1501
        %v1504 = vmul.f32 %v1427, %v370
        %v1505 = vmul.f32 %v1432, %v371
        %v1506 = vmul.f32 %v1437, %v372
        %v1507 = vmul.f32 %v1442, %v373
        %v1508 = vmul.f32 %v1447, %v374
        %v1509 = vmul.f32 %v1452, %v375
        %v1510 = vmul.f32 %v1457, %v376
        %v1511 = vmul.f32 %v1462, %v377
        %v1512 = vmul.f32 %v1467, %v378
        %v1513 = vmul.f32 %v1472, %v379
        %v1514 = vmul.f32 %v1477, %v380
        %v1515 = vmul.f32 %v1482, %v381
        %v1516 = vmul.f32 %v1487, %v382
        %v1517 = vmul.f32 %v1492, %v383
        %v1518 = vmul.f32 %v1497, %v384
        %v1519 = vmul.f32 %v1502, %v385
        %v1520 = vrot.slane %v1504, 4
        %v1521 = vadd.f32 %v1504, %v1520
        %v1522 = vrot.slane %v1521, 2
        %v1523 = vadd.f32 %v1521, %v1522
        %v1524 = vrot.slane %v1523, 1
        %v1525 = vadd.f32 %v1523, %v1524
        %v1526 = vrot.slane %v1505, 4
        %v1527 = vadd.f32 %v1505, %v1526
        %v1528 = vrot.slane %v1527, 2
        %v1529 = vadd.f32 %v1527, %v1528
        %v1530 = vrot.slane %v1529, 1
        %v1531 = vadd.f32 %v1529, %v1530
        %v1532 = vrot.slane %v1506, 4
        %v1533 = vadd.f32 %v1506, %v1532
        %v1534 = vrot.slane %v1533, 2
        %v1535 = vadd.f32 %v1533, %v1534
        %v1536 = vrot.slane %v1535, 1
        %v1537 = vadd.f32 %v1535, %v1536
        %v1538 = vrot.slane %v1507, 4
        %v1539 = vadd.f32 %v1507, %v1538
        %v1540 = vrot.slane %v1539, 2
        %v1541 = vadd.f32 %v1539, %v1540
        %v1542 = vrot.slane %v1541, 1
        %v1543 = vadd.f32 %v1541, %v1542
        %v1544 = vrot.slane %v1508, 4
        %v1545 = vadd.f32 %v1508, %v1544
        %v1546 = vrot.slane %v1545, 2
        %v1547 = vadd.f32 %v1545, %v1546
        %v1548 = vrot.slane %v1547, 1
        %v1549 = vadd.f32 %v1547, %v1548
        %v1550 = vrot.slane %v1509, 4
        %v1551 = vadd.f32 %v1509, %v1550
        %v1552 = vrot.slane %v1551, 2
        %v1553 = vadd.f32 %v1551, %v1552
        %v1554 = vrot.slane %v1553, 1
        %v1555 = vadd.f32 %v1553, %v1554
        %v1556 = vrot.slane %v1510, 4
        %v1557 = vadd.f32 %v1510, %v1556
        %v1558 = vrot.slane %v1557, 2
        %v1559 = vadd.f32 %v1557, %v1558
        %v1560 = vrot.slane %v1559, 1
        %v1561 = vadd.f32 %v1559, %v1560
        %v1562 = vrot.slane %v1511, 4
        %v1563 = vadd.f32 %v1511, %v1562
        %v1564 = vrot.slane %v1563, 2
        %v1565 = vadd.f32 %v1563, %v1564
        %v1566 = vrot.slane %v1565, 1
        %v1567 = vadd.f32 %v1565, %v1566
        %v1568 = vrot.slane %v1512, 4
        %v1569 = vadd.f32 %v1512, %v1568
        %v1570 = vrot.slane %v1569, 2
        %v1571 = vadd.f32 %v1569, %v1570
        %v1572 = vrot.slane %v1571, 1
        %v1573 = vadd.f32 %v1571, %v1572
        %v1574 = vrot.slane %v1513, 4
        %v1575 = vadd.f32 %v1513, %v1574
        %v1576 = vrot.slane %v1575, 2
        %v1577 = vadd.f32 %v1575, %v1576
        %v1578 = vrot.slane %v1577, 1
        %v1579 = vadd.f32 %v1577, %v1578
        %v1580 = vrot.slane %v1514, 4
        %v1581 = vadd.f32 %v1514, %v1580
        %v1582 = vrot.slane %v1581, 2
        %v1583 = vadd.f32 %v1581, %v1582
        %v1584 = vrot.slane %v1583, 1
        %v1585 = vadd.f32 %v1583, %v1584
        %v1586 = vrot.slane %v1515, 4
        %v1587 = vadd.f32 %v1515, %v1586
        %v1588 = vrot.slane %v1587, 2
        %v1589 = vadd.f32 %v1587, %v1588
        %v1590 = vrot.slane %v1589, 1
        %v1591 = vadd.f32 %v1589, %v1590
        %v1592 = vrot.slane %v1516, 4
        %v1593 = vadd.f32 %v1516, %v1592
        %v1594 = vrot.slane %v1593, 2
        %v1595 = vadd.f32 %v1593, %v1594
        %v1596 = vrot.slane %v1595, 1
        %v1597 = vadd.f32 %v1595, %v1596
        %v1598 = vrot.slane %v1517, 4
        %v1599 = vadd.f32 %v1517, %v1598
        %v1600 = vrot.slane %v1599, 2
        %v1601 = vadd.f32 %v1599, %v1600
        %v1602 = vrot.slane %v1601, 1
        %v1603 = vadd.f32 %v1601, %v1602
        %v1604 = vrot.slane %v1518, 4
        %v1605 = vadd.f32 %v1518, %v1604
        %v1606 = vrot.slane %v1605, 2
        %v1607 = vadd.f32 %v1605, %v1606
        %v1608 = vrot.slane %v1607, 1
        %v1609 = vadd.f32 %v1607, %v1608
        %v1610 = vrot.slane %v1519, 4
        %v1611 = vadd.f32 %v1519, %v1610
        %v1612 = vrot.slane %v1611, 2
        %v1613 = vadd.f32 %v1611, %v1612
        %v1614 = vrot.slane %v1613, 1
        %v1615 = vadd.f32 %v1613, %v1614
        %v1616 = vmul.f32 %v1525, %v1525
        %v1617 = vmul.f32 %v1531, %v1531
        %v1618 = vmul.f32 %v1537, %v1537
        %v1619 = vmul.f32 %v1543, %v1543
        %v1620 = vmul.f32 %v1549, %v1549
        %v1621 = vmul.f32 %v1555, %v1555
        %v1622 = vmul.f32 %v1561, %v1561
        %v1623 = vmul.f32 %v1567, %v1567
        %v1624 = vmul.f32 %v1573, %v1573
        %v1625 = vmul.f32 %v1579, %v1579
        %v1626 = vmul.f32 %v1585, %v1585
        %v1627 = vmul.f32 %v1591, %v1591
        %v1628 = vmul.f32 %v1597, %v1597
        %v1629 = vmul.f32 %v1603, %v1603
        %v1630 = vmul.f32 %v1609, %v1609
        %v1631 = vmul.f32 %v1615, %v1615
        %v1648 = vsel %vm1014, %v1617, %v1616
        %v1649 = vsel %vm1016, %v1618, %v1648
        %v1650 = vsel %vm1018, %v1619, %v1649
        %v1651 = vsel %vm1020, %v1620, %v1650
        %v1652 = vsel %vm1022, %v1621, %v1651
        %v1653 = vsel %vm1024, %v1622, %v1652
        %v1654 = vsel %vm1026, %v1623, %v1653
        %v1655 = vsel %vm1014, %v1625, %v1624
        %v1656 = vsel %vm1016, %v1626, %v1655
        %v1657 = vsel %vm1018, %v1627, %v1656
        %v1658 = vsel %vm1020, %v1628, %v1657
        %v1659 = vsel %vm1022, %v1629, %v1658
        %v1660 = vsel %vm1024, %v1630, %v1659
        %v1661 = vsel %vm1026, %v1631, %v1660
        %1664 = vadd.xlane.f32.xlu0 %v1654
        %v1665 = vpop.xlane.xlu0 %1664
        %1666 = vadd.xlane.f32.xlu0 %v1661
        %v1667 = vpop.xlane.xlu0 %1666
        %v1668 = vrsqrt.pop %v1665
        %v1669 = vmul.f32 %v1665, %v1668
        %vm1670 = vcmp.eq.f32.partialorder %v1665, inf
        %v1671 = vsel %vm1670, %v1665, %v1669
        %vm1672 = vcmp.eq.f32.partialorder %v1665, 0.0
        %v1673 = vand.u32 %v1665, 2147483648
        %v1674 = vsel %vm1672, %v1673, %v1671
        %v1675 = vrsqrt.pop %v1667
        %v1676 = vmul.f32 %v1667, %v1675
        %vm1677 = vcmp.eq.f32.partialorder %v1667, inf
        %v1678 = vsel %vm1677, %v1667, %v1676
        %vm1679 = vcmp.eq.f32.partialorder %v1667, 0.0
        %v1680 = vand.u32 %v1667, 2147483648
        %v1681 = vsel %vm1679, %v1680, %v1678
        %v1682 = vadd.f32 %v1674, 1e-08
        %v1683 = vadd.f32 %v1681, 1e-08
        %v1686 = vrot.slane %v1682, 1
        %v1687 = vrot.slane %v1682, 2
        %v1688 = vrot.slane %v1682, 3
        %v1689 = vrot.slane %v1682, 4
        %v1690 = vrot.slane %v1682, 5
        %v1691 = vrot.slane %v1682, 6
        %v1692 = vrot.slane %v1682, 7
        %v1693 = vrot.slane %v1683, 1
        %v1694 = vrot.slane %v1683, 2
        %v1695 = vrot.slane %v1683, 3
        %v1696 = vrot.slane %v1683, 4
        %v1697 = vrot.slane %v1683, 5
        %v1698 = vrot.slane %v1683, 6
        %v1699 = vrot.slane %v1683, 7
        %v1716 = vrcp.pop %v1682
        %v1717 = vmul.f32 %v1525, %v1716
        %v1718 = vrcp.pop %v1686
        %v1719 = vmul.f32 %v1531, %v1718
        %v1720 = vrcp.pop %v1687
        %v1721 = vmul.f32 %v1537, %v1720
        %v1722 = vrcp.pop %v1688
        %v1723 = vmul.f32 %v1543, %v1722
        %v1724 = vrcp.pop %v1689
        %v1725 = vmul.f32 %v1549, %v1724
        %v1726 = vrcp.pop %v1690
        %v1727 = vmul.f32 %v1555, %v1726
        %v1728 = vrcp.pop %v1691
        %v1729 = vmul.f32 %v1561, %v1728
        %v1730 = vrcp.pop %v1692
        %v1731 = vmul.f32 %v1567, %v1730
        %v1732 = vrcp.pop %v1683
        %v1733 = vmul.f32 %v1573, %v1732
        %v1734 = vrcp.pop %v1693
        %v1735 = vmul.f32 %v1579, %v1734
        %v1736 = vrcp.pop %v1694
        %v1737 = vmul.f32 %v1585, %v1736
        %v1738 = vrcp.pop %v1695
        %v1739 = vmul.f32 %v1591, %v1738
        %v1740 = vrcp.pop %v1696
        %v1741 = vmul.f32 %v1597, %v1740
        %v1742 = vrcp.pop %v1697
        %v1743 = vmul.f32 %v1603, %v1742
        %v1744 = vrcp.pop %v1698
        %v1745 = vmul.f32 %v1609, %v1744
        %v1746 = vrcp.pop %v1699
        %v1747 = vmul.f32 %v1615, %v1746
        %v1764 = vrot.slane %v1719, 7
        %v1765 = vsel %vm1014, %v1764, %v1717
        %v1766 = vrot.slane %v1721, 6
        %v1767 = vsel %vm1016, %v1766, %v1765
        %v1768 = vrot.slane %v1723, 5
        %v1769 = vsel %vm1018, %v1768, %v1767
        %v1770 = vrot.slane %v1725, 4
        %v1771 = vsel %vm1020, %v1770, %v1769
        %v1772 = vrot.slane %v1727, 3
        %v1773 = vsel %vm1022, %v1772, %v1771
        %v1774 = vrot.slane %v1729, 2
        %v1775 = vsel %vm1024, %v1774, %v1773
        %v1776 = vrot.slane %v1731, 1
        %v1777 = vsel %vm1026, %v1776, %v1775
        %v1778 = vrot.slane %v1735, 7
        %v1779 = vsel %vm1014, %v1778, %v1733
        %v1780 = vrot.slane %v1737, 6
        %v1781 = vsel %vm1016, %v1780, %v1779
        %v1782 = vrot.slane %v1739, 5
        %v1783 = vsel %vm1018, %v1782, %v1781
        %v1784 = vrot.slane %v1741, 4
        %v1785 = vsel %vm1020, %v1784, %v1783
        %v1786 = vrot.slane %v1743, 3
        %v1787 = vsel %vm1022, %v1786, %v1785
        %v1788 = vrot.slane %v1745, 2
        %v1789 = vsel %vm1024, %v1788, %v1787
        %v1790 = vrot.slane %v1747, 1
        %v1791 = vsel %vm1026, %v1790, %v1789
        %1794 = vst [vmem:[%s365] sm:$0xff] %v1777
        %1795 = vst [vmem:[%s365 + $0x8] sm:$0xff] %v1791
        %s1796 = sand.u32 %s193, 1
        %s1797 = scalar_lea.sflag [#allocation4], %s1796
        %s1798 = sand.u32 %s193, 1
        %s1799 = smul.addr %s1798, 16
        %s1800 = scalar_lea.vmem [#allocation10], %s1799
        // Predicated region
        $region65: #{tpu_custom_call.1} parent=47 // pred_check
          %p1801 = pneg %p203
        $region66: #{tpu_custom_call.1} parent=47 // pred_check_branch
          %1803 = sbr.rel (%p1801) target = $region68
        $region67: #{tpu_custom_call.1} parent=47 // pred_region
          %s1804 = smul.u32 2, %s28
          %s1806 = ssub.s32 256, 256
          %1807 = vsyncadd %s1797, %s1806
          %s1808 = smul.addr %s1804, 128
          %s1809 = scalar_lea.hbm %s7, %s1808
          %s1810 = sshll.u32 %s1800, 4
          %s1811 = int_to_ptr.vmem [resolvable:$true] %s1810
          %1816 = dma.vmem_to_hbm [thread:$0]  %s1811, 256, %s1809, %s1797, 128, 128, 8
        $region68: #{tpu_custom_call.1} parent=47 // pred_fallthru
          _
      $region48: #{tpu_custom_call.1} parent=5 // pred_fallthru
        _
      %p1817 = scmp.le.s32.totalorder 2, %s23
      // Predicated region
      $region69: #{tpu_custom_call.1} parent=5 // pred_check
        %p1818 = pneg %p1817
      $region70: #{tpu_custom_call.1} parent=5 // pred_check_branch
        %1820 = sbr.rel (%p1818) target = $region72
      $region71: #{tpu_custom_call.1} parent=5 // pred_region
        %s1821 = ssub.s32 %s23, 2
        // Predicated region
        $region73: #{tpu_custom_call.1} parent=71 // pred_check
          %p1822 = pneg %p209
        $region74: #{tpu_custom_call.1} parent=71 // pred_check_branch
          %1824 = sbr.rel (%p1822) target = $region76
        $region75: #{tpu_custom_call.1} parent=71 // pred_region
          %s1825 = sand.u32 %s194, 1
          %s1826 = scalar_lea.sflag [#allocation4], %s1825
          %s1827 = sand.u32 %s194, 1
          %s1828 = smul.addr %s1827, 16
          %s1829 = scalar_lea.vmem [#allocation10], %s1828
          %1830 = dma.done %s1826, 256
        $region76: #{tpu_custom_call.1} parent=71 // pred_fallthru
          _
      $region72: #{tpu_custom_call.1} parent=5 // pred_fallthru
        _
    $region6: #{tpu_custom_call.1} parent=1 // loop_footer
      %s27 = sadd.s32 1, %s23
    $region7: #{tpu_custom_call.1} parent=1 // loop_footer_branch
      %22 = sbr.rel target = $region3
    $region8: #{tpu_custom_call.1} parent=1 // loop_exit
      _
    %1831 = vsyncpa [#allocation3], 1
    %s1832 = scalar_lea.sflag [#allocation3], 1
    %1833 = vsyncpa %s1832, 1
    %1834 = vsyncpa [#allocation6], 1
    %s1835 = scalar_lea.sflag [#allocation6], 1
    %1836 = vsyncpa %s1835, 1
    %1837 = vsyncpa [#allocation9], 1
    %1838 = vsyncpa [#allocation4], 1
    %s1839 = scalar_lea.sflag [#allocation4], 1
    %1840 = vsyncpa %s1839, 1

</llo_original>
